<compile_context>
chip_gen: v6e
topology: v6e:2x2x1
jax: 0.10.0
libtpu: 0.0.40
codegen_flags: <defaults>
</compile_context>

<pallas_src>
import math

import jax
import jax.numpy as jnp
from jax.experimental import pallas as pl
from jax.experimental.pallas import tpu as pltpu

# ---- small synthetic BERT config (shapes implied by the module's forward) ----
VOCAB = 100
HIDDEN = 32
N_HEADS = 2
HEAD_DIM = HIDDEN // N_HEADS
INTERMEDIATE = 64
N_LAYERS = 2
MAX_POS = 64
LN_EPS = 1e-12
MASK_BIAS = -10000.0  # classic BERT additive mask value


# ----------------------------- fused Pallas kernel ----------------------------
def _layernorm(x, g, b):
    mean = jnp.mean(x, axis=-1, keepdims=True)
    xc = x - mean
    var = jnp.mean(xc * xc, axis=-1, keepdims=True)
    inv = jax.lax.rsqrt(var + LN_EPS)
    return xc * inv * g + b


def _matmul_bias(x, w, b):
    # bf16 MXU operands, f32 accumulate; elementwise math stays f32 (v5e-safe).
    return jnp.dot(x.astype(jnp.bfloat16), w.astype(jnp.bfloat16),
                   preferred_element_type=jnp.float32) + b


def _gelu_tanh(y):
    # TODO(synk): tanh-approx GELU (HF "gelu_new"); HF default erf-GELU differs by <1e-3.
    c = jnp.float32(0.7978845608028654)  # sqrt(2/pi)
    return 0.5 * y * (1.0 + jnp.tanh(c * (y + 0.044715 * y * y * y)))


def _bert_encoder_kernel(emb_ref, bias_ref, emb_g_ref, emb_b_ref,
                         wqkv_ref, bqkv_ref, wo_ref, bo_ref,
                         ln1_g_ref, ln1_b_ref,
                         wi_ref, bi_ref, wo2_ref, bo2_ref,
                         ln2_g_ref, ln2_b_ref,
                         cls_ref):
    # One grid step == one batch item. emb_ref: (S, H), bias_ref: (1, S).
    scale = jnp.float32(1.0 / math.sqrt(HEAD_DIM))
    bias = bias_ref[...]                                              # (1, S)
    x = _layernorm(emb_ref[...], emb_g_ref[...], emb_b_ref[...])      # (S, H)

    for l in range(N_LAYERS):                                         # static unroll
        # Fused Q|K|V projection: lane width 3H = 96.
        qkv = _matmul_bias(x, wqkv_ref[l], bqkv_ref[l])               # (S, 3H)
        ctx_heads = []
        for h in range(N_HEADS):                                      # static unroll
            q = qkv[:, h * HEAD_DIM:(h + 1) * HEAD_DIM]
            k = qkv[:, HIDDEN + h * HEAD_DIM:HIDDEN + (h + 1) * HEAD_DIM]
            v = qkv[:, 2 * HIDDEN + h * HEAD_DIM:2 * HIDDEN + (h + 1) * HEAD_DIM]
            s = jnp.dot(q.astype(jnp.bfloat16), k.T.astype(jnp.bfloat16),
                        preferred_element_type=jnp.float32) * scale + bias
            s = s - jnp.max(s, axis=-1, keepdims=True)
            p = jnp.exp(s)
            p = p * pl.reciprocal(jnp.sum(p, axis=-1, keepdims=True), approx=True)
            ctx_heads.append(jnp.dot(p.astype(jnp.bfloat16), v.astype(jnp.bfloat16),
                                     preferred_element_type=jnp.float32))
        ctx = jnp.concatenate(ctx_heads, axis=-1)                     # (S, H)

        attn_out = _matmul_bias(ctx, wo_ref[l], bo_ref[l])
        x1 = _layernorm(attn_out + x, ln1_g_ref[l], ln1_b_ref[l])
        inter = _gelu_tanh(_matmul_bias(x1, wi_ref[l], bi_ref[l]))    # (S, I)
        ff = _matmul_bias(inter, wo2_ref[l], bo2_ref[l])
        x = _layernorm(ff + x1, ln2_g_ref[l], ln2_b_ref[l])

    cls_ref[...] = x[0:1, :]                                          # [CLS] row


def bert_encoder_cls(emb, mask_bias, p):
    """emb: (B, S, H) f32, mask_bias: (B, 1, S) f32 -> (B, H) [CLS] hidden state."""
    B, S, H = emb.shape
    L, I = N_LAYERS, INTERMEDIATE

    def wspec(shape):
        n = len(shape)
        return pl.BlockSpec(shape, lambda b, n=n: (0,) * n)   # whole array, shared

    in_specs = [
        pl.BlockSpec((None, S, H), lambda b: (b, 0, 0)),      # embeddings (per batch)
        pl.BlockSpec((None, 1, S), lambda b: (b, 0, 0)),      # additive mask bias
        wspec((1, H)), wspec((1, H)),                         # embedding LN
        wspec((L, H, 3 * H)), wspec((L, 1, 3 * H)),           # fused QKV
        wspec((L, H, H)), wspec((L, 1, H)),                   # attention output proj
        wspec((L, 1, H)), wspec((L, 1, H)),                   # LN1
        wspec((L, H, I)), wspec((L, 1, I)),                   # FFN in
        wspec((L, I, H)), wspec((L, 1, H)),                   # FFN out
        wspec((L, 1, H)), wspec((L, 1, H)),                   # LN2
    ]
    out_spec = pl.BlockSpec((None, 1, H), lambda b: (b, 0, 0))

    args = (emb, mask_bias, p["emb_ln_g"], p["emb_ln_b"],
            p["wqkv"], p["bqkv"], p["wo"], p["bo"],
            p["ln1_g"], p["ln1_b"],
            p["wi"], p["bi"], p["wo2"], p["bo2"],
            p["ln2_g"], p["ln2_b"])

    flops_per_item = (2 * S * H * 3 * H            # fused QKV
                      + N_HEADS * 4 * S * S * HEAD_DIM  # qk^T and pv
                      + 2 * S * H * H              # output proj
                      + 4 * S * H * I)             # FFN
    cost = pl.CostEstimate(
        flops=B * N_LAYERS * flops_per_item,
        transcendentals=B * N_LAYERS * (N_HEADS * S * S + S * I + 2 * S),
        bytes_accessed=sum(4 * a.size for a in args) + 4 * B * H,
    )

    out = pl.pallas_call(
        _bert_encoder_kernel,
        out_shape=jax.ShapeDtypeStruct((B, 1, H), jnp.float32),
        grid=(B,),
        in_specs=in_specs,
        out_specs=out_spec,
        compiler_params=pltpu.CompilerParams(
            dimension_semantics=("parallel",)),   # batch items -> both TCs on v7x
        cost_estimate=cost,
    )(*args)
    return out[:, 0, :]                                       # (B, H)


# ----------------------------- model assembly --------------------------------
def init_params(key):
    std = 0.02
    ks = jax.random.split(key, 4 + N_LAYERS)

    def norm(k, shape):
        return jax.random.normal(k, shape, jnp.float32) * std

    wq, wk, wv, wo, wi, wo2 = [], [], [], [], [], []
    for l in range(N_LAYERS):
        kk = jax.random.split(ks[4 + l], 6)
        wq.append(norm(kk[0], (HIDDEN, HIDDEN)))
        wk.append(norm(kk[1], (HIDDEN, HIDDEN)))
        wv.append(norm(kk[2], (HIDDEN, HIDDEN)))
        wo.append(norm(kk[3], (HIDDEN, HIDDEN)))
        wi.append(norm(kk[4], (HIDDEN, INTERMEDIATE)))
        wo2.append(norm(kk[5], (INTERMEDIATE, HIDDEN)))
    L = N_LAYERS
    return {
        "word_emb": norm(ks[0], (VOCAB, HIDDEN)),
        "pos_emb": norm(ks[1], (MAX_POS, HIDDEN)),
        "type_emb": norm(ks[2], (2, HIDDEN)),
        "emb_ln_g": jnp.ones((1, HIDDEN), jnp.float32),
        "emb_ln_b": jnp.zeros((1, HIDDEN), jnp.float32),
        # per-layer weights stacked on a leading layer axis; Q|K|V fused on the N axis
        "wqkv": jnp.stack([jnp.concatenate([wq[l], wk[l], wv[l]], axis=1)
                           for l in range(L)]),
        "bqkv": jnp.zeros((L, 1, 3 * HIDDEN), jnp.float32),
        "wo": jnp.stack(wo),
        "bo": jnp.zeros((L, 1, HIDDEN), jnp.float32),
        "ln1_g": jnp.ones((L, 1, HIDDEN), jnp.float32),
        "ln1_b": jnp.zeros((L, 1, HIDDEN), jnp.float32),
        "wi": jnp.stack(wi),
        "bi": jnp.zeros((L, 1, INTERMEDIATE), jnp.float32),
        "wo2": jnp.stack(wo2),
        "bo2": jnp.zeros((L, 1, HIDDEN), jnp.float32),
        "ln2_g": jnp.ones((L, 1, HIDDEN), jnp.float32),
        "ln2_b": jnp.zeros((L, 1, HIDDEN), jnp.float32),
    }


def bert_forward(params, input_ids, attention_mask, latent=None, mask=None):
    """Returns last_hidden_state[:, 0, :] (the [CLS] token), matching Bert.forward."""
    # TODO(synk): `latent` / `mask` are nonstandard args of the wrapped custom BertModel
    # (default None in the reference forward); they are ignored here.
    B, S = input_ids.shape
    # embedding gathers are glue; everything else runs inside the fused Pallas kernel
    we = params["word_emb"][input_ids]                          # (B, S, H)
    pe = params["pos_emb"][jnp.arange(S)][None, :, :]           # (1, S, H)
    te = params["type_emb"][0][None, None, :]                   # token_type_ids == 0
    emb = we + pe + te                                          # (B, S, H)
    # additive attention-mask bias, (B, 1, S)
    mask_bias = (1.0 - attention_mask.astype(jnp.float32))[:, None, :] * MASK_BIAS
    return bert_encoder_cls(emb, mask_bias, params)             # (B, H)


if __name__ == "__main__":
    key = jax.random.PRNGKey(0)
    pkey, ikey = jax.random.split(key)
    params = init_params(pkey)

    B, S = 2, 8
    input_ids = jax.random.randint(ikey, (B, S), 0, VOCAB, dtype=jnp.int32)
    attention_mask = jnp.array([[1, 1, 1, 1, 1, 1, 1, 1],
                                [1, 1, 1, 1, 1, 0, 0, 0]], dtype=jnp.int32)

    text = jax.jit(bert_forward)(params, input_ids, attention_mask)
    jax.block_until_ready(text)
    assert text.shape == (B, HIDDEN) and text.dtype == jnp.float32
    print("KERNEL_OK")
</pallas_src>

<mosaic_0001>
module attributes {stable_mosaic.version = 11 : i64} {
  func.func @_bert_encoder_kernel(%arg0: i32, %arg1: memref<1x8x32xf32, #tpu.memory_space<vmem>>, %arg2: memref<1x1x8xf32, #tpu.memory_space<vmem>>, %arg3: memref<1x32xf32, #tpu.memory_space<vmem>>, %arg4: memref<1x32xf32, #tpu.memory_space<vmem>>, %arg5: memref<2x32x96xf32, #tpu.memory_space<vmem>>, %arg6: memref<2x1x96xf32, #tpu.memory_space<vmem>>, %arg7: memref<2x32x32xf32, #tpu.memory_space<vmem>>, %arg8: memref<2x1x32xf32, #tpu.memory_space<vmem>>, %arg9: memref<2x1x32xf32, #tpu.memory_space<vmem>>, %arg10: memref<2x1x32xf32, #tpu.memory_space<vmem>>, %arg11: memref<2x32x64xf32, #tpu.memory_space<vmem>>, %arg12: memref<2x1x64xf32, #tpu.memory_space<vmem>>, %arg13: memref<2x64x32xf32, #tpu.memory_space<vmem>>, %arg14: memref<2x1x32xf32, #tpu.memory_space<vmem>>, %arg15: memref<2x1x32xf32, #tpu.memory_space<vmem>>, %arg16: memref<2x1x32xf32, #tpu.memory_space<vmem>>, %arg17: memref<1x1x32xf32, #tpu.memory_space<vmem>>) attributes {dimension_semantics = [#tpu.dimension_semantics<parallel>], iteration_bounds = array<i64: 2>, scalar_prefetch = 0 : i64, scratch_operands = 0 : i64, tpu.core_type = #tpu.core_type<tc>, window_params = [{transform_indices = @transform_0, window_bounds = array<i64: 1, 8, 32>}, {transform_indices = @transform_1, window_bounds = array<i64: 1, 1, 8>}, {pipeline_mode = #tpu.pipeline_mode<synchronous>, transform_indices = @transform_2, window_bounds = array<i64: 1, 32>}, {pipeline_mode = #tpu.pipeline_mode<synchronous>, transform_indices = @transform_3, window_bounds = array<i64: 1, 32>}, {pipeline_mode = #tpu.pipeline_mode<synchronous>, transform_indices = @transform_4, window_bounds = array<i64: 2, 32, 96>}, {pipeline_mode = #tpu.pipeline_mode<synchronous>, transform_indices = @transform_5, window_bounds = array<i64: 2, 1, 96>}, {pipeline_mode = #tpu.pipeline_mode<synchronous>, transform_indices = @transform_6, window_bounds = array<i64: 2, 32, 32>}, {pipeline_mode = #tpu.pipeline_mode<synchronous>, transform_indices = @transform_7, window_bounds = array<i64: 2, 1, 32>}, {pipeline_mode = #tpu.pipeline_mode<synchronous>, transform_indices = @transform_8, window_bounds = array<i64: 2, 1, 32>}, {pipeline_mode = #tpu.pipeline_mode<synchronous>, transform_indices = @transform_9, window_bounds = array<i64: 2, 1, 32>}, {pipeline_mode = #tpu.pipeline_mode<synchronous>, transform_indices = @transform_10, window_bounds = array<i64: 2, 32, 64>}, {pipeline_mode = #tpu.pipeline_mode<synchronous>, transform_indices = @transform_11, window_bounds = array<i64: 2, 1, 64>}, {pipeline_mode = #tpu.pipeline_mode<synchronous>, transform_indices = @transform_12, window_bounds = array<i64: 2, 64, 32>}, {pipeline_mode = #tpu.pipeline_mode<synchronous>, transform_indices = @transform_13, window_bounds = array<i64: 2, 1, 32>}, {pipeline_mode = #tpu.pipeline_mode<synchronous>, transform_indices = @transform_14, window_bounds = array<i64: 2, 1, 32>}, {pipeline_mode = #tpu.pipeline_mode<synchronous>, transform_indices = @transform_15, window_bounds = array<i64: 2, 1, 32>}, {transform_indices = @transform_16, window_bounds = array<i64: 1, 1, 32>}]} {
    %c0 = arith.constant 0 : index
    %c0_0 = arith.constant 0 : index
    %c0_1 = arith.constant 0 : index
    %0 = vector.load %arg2[%c0, %c0_0, %c0_1] : memref<1x1x8xf32, #tpu.memory_space<vmem>>, vector<1x1x8xf32>
    %1 = vector.shape_cast %0 : vector<1x1x8xf32> to vector<1x8xf32>
    %c0_2 = arith.constant 0 : index
    %c0_3 = arith.constant 0 : index
    %c0_4 = arith.constant 0 : index
    %2 = vector.load %arg1[%c0_2, %c0_3, %c0_4] : memref<1x8x32xf32, #tpu.memory_space<vmem>>, vector<1x8x32xf32>
    %3 = vector.shape_cast %2 : vector<1x8x32xf32> to vector<8x32xf32>
    %c0_5 = arith.constant 0 : index
    %c0_6 = arith.constant 0 : index
    %4 = vector.load %arg3[%c0_5, %c0_6] : memref<1x32xf32, #tpu.memory_space<vmem>>, vector<1x32xf32>
    %c0_7 = arith.constant 0 : index
    %c0_8 = arith.constant 0 : index
    %5 = vector.load %arg4[%c0_7, %c0_8] : memref<1x32xf32, #tpu.memory_space<vmem>>, vector<1x32xf32>
    %cst = arith.constant dense<0.000000e+00> : vector<8xf32>
    %6 = vector.multi_reduction <add>, %3, %cst [1] : vector<8x32xf32> to vector<8xf32>
    %7 = vector.shape_cast %6 : vector<8xf32> to vector<8x1xf32>
    %cst_9 = arith.constant 3.200000e+01 : f32
    %8 = vector.broadcast %cst_9 : f32 to vector<8x1xf32>
    %9 = arith.divf %7, %8 : vector<8x1xf32>
    %10 = vector.broadcast %9 : vector<8x1xf32> to vector<8x32xf32>
    %11 = arith.subf %3, %10 : vector<8x32xf32>
    %12 = arith.mulf %11, %11 : vector<8x32xf32>
    %cst_10 = arith.constant dense<0.000000e+00> : vector<8xf32>
    %13 = vector.multi_reduction <add>, %12, %cst_10 [1] : vector<8x32xf32> to vector<8xf32>
    %14 = vector.shape_cast %13 : vector<8xf32> to vector<8x1xf32>
    %cst_11 = arith.constant 3.200000e+01 : f32
    %15 = vector.broadcast %cst_11 : f32 to vector<8x1xf32>
    %16 = arith.divf %14, %15 : vector<8x1xf32>
    %cst_12 = arith.constant 9.99999996E-13 : f32
    %17 = vector.broadcast %cst_12 : f32 to vector<8x1xf32>
    %18 = arith.addf %16, %17 : vector<8x1xf32>
    %19 = math.rsqrt %18 : vector<8x1xf32>
    %20 = vector.broadcast %19 : vector<8x1xf32> to vector<8x32xf32>
    %21 = arith.mulf %11, %20 : vector<8x32xf32>
    %22 = vector.broadcast %4 : vector<1x32xf32> to vector<8x32xf32>
    %23 = arith.mulf %21, %22 : vector<8x32xf32>
    %24 = vector.broadcast %5 : vector<1x32xf32> to vector<8x32xf32>
    %25 = arith.addf %23, %24 : vector<8x32xf32>
    %c0_13 = arith.constant 0 : index
    %c0_14 = arith.constant 0 : index
    %c0_15 = arith.constant 0 : index
    %26 = vector.load %arg5[%c0_13, %c0_14, %c0_15] : memref<2x32x96xf32, #tpu.memory_space<vmem>>, vector<1x32x96xf32>
    %27 = vector.shape_cast %26 : vector<1x32x96xf32> to vector<32x96xf32>
    %c0_16 = arith.constant 0 : index
    %c0_17 = arith.constant 0 : index
    %c0_18 = arith.constant 0 : index
    %28 = vector.load %arg6[%c0_16, %c0_17, %c0_18] : memref<2x1x96xf32, #tpu.memory_space<vmem>>, vector<1x1x96xf32>
    %29 = vector.shape_cast %28 : vector<1x1x96xf32> to vector<1x96xf32>
    %30 = arith.truncf %25 : vector<8x32xf32> to vector<8x32xbf16>
    %31 = arith.truncf %27 : vector<32x96xf32> to vector<32x96xbf16>
    %cst_19 = arith.constant dense<0.000000e+00> : vector<8x96xf32>
    %32 = tpu.matmul %30, %31, %cst_19 {dimension_numbers = #tpu.dot_dimension_numbers<[1], [0], [0], [1], [0, 0, 1, 1], [], []>} : vector<8x32xbf16>, vector<32x96xbf16>, vector<8x96xf32> -> vector<8x96xf32>
    %33 = vector.broadcast %29 : vector<1x96xf32> to vector<8x96xf32>
    %34 = arith.addf %32, %33 : vector<8x96xf32>
    %35 = vector.extract_strided_slice %34 {offsets = [0, 0], sizes = [8, 16], strides = [1, 1]} : vector<8x96xf32> to vector<8x16xf32>
    %36 = vector.extract_strided_slice %34 {offsets = [0, 32], sizes = [8, 16], strides = [1, 1]} : vector<8x96xf32> to vector<8x16xf32>
    %37 = vector.extract_strided_slice %34 {offsets = [0, 64], sizes = [8, 16], strides = [1, 1]} : vector<8x96xf32> to vector<8x16xf32>
    %38 = arith.truncf %35 : vector<8x16xf32> to vector<8x16xbf16>
    %39 = tpu.transpose %36, [1, 0] : vector<8x16xf32> -> vector<16x8xf32>
    %40 = arith.truncf %39 : vector<16x8xf32> to vector<16x8xbf16>
    %cst_20 = arith.constant dense<0.000000e+00> : vector<8x8xf32>
    %41 = tpu.matmul %38, %40, %cst_20 {dimension_numbers = #tpu.dot_dimension_numbers<[1], [0], [0], [1], [0, 0, 1, 1], [], []>} : vector<8x16xbf16>, vector<16x8xbf16>, vector<8x8xf32> -> vector<8x8xf32>
    %cst_21 = arith.constant 2.500000e-01 : f32
    %42 = vector.broadcast %cst_21 : f32 to vector<8x8xf32>
    %43 = arith.mulf %41, %42 : vector<8x8xf32>
    %44 = vector.broadcast %1 : vector<1x8xf32> to vector<8x8xf32>
    %45 = arith.addf %43, %44 : vector<8x8xf32>
    %cst_22 = arith.constant dense<0xFF800000> : vector<8xf32>
    %46 = vector.multi_reduction <maximumf>, %45, %cst_22 [1] : vector<8x8xf32> to vector<8xf32>
    %47 = vector.shape_cast %46 : vector<8xf32> to vector<8x1xf32>
    %48 = vector.broadcast %47 : vector<8x1xf32> to vector<8x8xf32>
    %49 = arith.subf %45, %48 : vector<8x8xf32>
    %50 = math.exp %49 : vector<8x8xf32>
    %cst_23 = arith.constant dense<0.000000e+00> : vector<8xf32>
    %51 = vector.multi_reduction <add>, %50, %cst_23 [1] : vector<8x8xf32> to vector<8xf32>
    %52 = vector.shape_cast %51 : vector<8xf32> to vector<8x1xf32>
    %53 = tpu.reciprocal %52 {approx = true} : vector<8x1xf32> -> vector<8x1xf32>
    %54 = vector.broadcast %53 : vector<8x1xf32> to vector<8x8xf32>
    %55 = arith.mulf %50, %54 : vector<8x8xf32>
    %56 = arith.truncf %55 : vector<8x8xf32> to vector<8x8xbf16>
    %57 = arith.truncf %37 : vector<8x16xf32> to vector<8x16xbf16>
    %cst_24 = arith.constant dense<0.000000e+00> : vector<8x16xf32>
    %58 = tpu.matmul %56, %57, %cst_24 {dimension_numbers = #tpu.dot_dimension_numbers<[1], [0], [0], [1], [0, 0, 1, 1], [], []>} : vector<8x8xbf16>, vector<8x16xbf16>, vector<8x16xf32> -> vector<8x16xf32>
    %59 = vector.extract_strided_slice %34 {offsets = [0, 16], sizes = [8, 16], strides = [1, 1]} : vector<8x96xf32> to vector<8x16xf32>
    %60 = vector.extract_strided_slice %34 {offsets = [0, 48], sizes = [8, 16], strides = [1, 1]} : vector<8x96xf32> to vector<8x16xf32>
    %61 = vector.extract_strided_slice %34 {offsets = [0, 80], sizes = [8, 16], strides = [1, 1]} : vector<8x96xf32> to vector<8x16xf32>
    %62 = arith.truncf %59 : vector<8x16xf32> to vector<8x16xbf16>
    %63 = tpu.transpose %60, [1, 0] : vector<8x16xf32> -> vector<16x8xf32>
    %64 = arith.truncf %63 : vector<16x8xf32> to vector<16x8xbf16>
    %cst_25 = arith.constant dense<0.000000e+00> : vector<8x8xf32>
    %65 = tpu.matmul %62, %64, %cst_25 {dimension_numbers = #tpu.dot_dimension_numbers<[1], [0], [0], [1], [0, 0, 1, 1], [], []>} : vector<8x16xbf16>, vector<16x8xbf16>, vector<8x8xf32> -> vector<8x8xf32>
    %cst_26 = arith.constant 2.500000e-01 : f32
    %66 = vector.broadcast %cst_26 : f32 to vector<8x8xf32>
    %67 = arith.mulf %65, %66 : vector<8x8xf32>
    %68 = vector.broadcast %1 : vector<1x8xf32> to vector<8x8xf32>
    %69 = arith.addf %67, %68 : vector<8x8xf32>
    %cst_27 = arith.constant dense<0xFF800000> : vector<8xf32>
    %70 = vector.multi_reduction <maximumf>, %69, %cst_27 [1] : vector<8x8xf32> to vector<8xf32>
    %71 = vector.shape_cast %70 : vector<8xf32> to vector<8x1xf32>
    %72 = vector.broadcast %71 : vector<8x1xf32> to vector<8x8xf32>
    %73 = arith.subf %69, %72 : vector<8x8xf32>
    %74 = math.exp %73 : vector<8x8xf32>
    %cst_28 = arith.constant dense<0.000000e+00> : vector<8xf32>
    %75 = vector.multi_reduction <add>, %74, %cst_28 [1] : vector<8x8xf32> to vector<8xf32>
    %76 = vector.shape_cast %75 : vector<8xf32> to vector<8x1xf32>
    %77 = tpu.reciprocal %76 {approx = true} : vector<8x1xf32> -> vector<8x1xf32>
    %78 = vector.broadcast %77 : vector<8x1xf32> to vector<8x8xf32>
    %79 = arith.mulf %74, %78 : vector<8x8xf32>
    %80 = arith.truncf %79 : vector<8x8xf32> to vector<8x8xbf16>
    %81 = arith.truncf %61 : vector<8x16xf32> to vector<8x16xbf16>
    %cst_29 = arith.constant dense<0.000000e+00> : vector<8x16xf32>
    %82 = tpu.matmul %80, %81, %cst_29 {dimension_numbers = #tpu.dot_dimension_numbers<[1], [0], [0], [1], [0, 0, 1, 1], [], []>} : vector<8x8xbf16>, vector<8x16xbf16>, vector<8x16xf32> -> vector<8x16xf32>
    %83 = tpu.concatenate %58, %82 in 1 : vector<8x16xf32>, vector<8x16xf32> -> vector<8x32xf32>
    %c0_30 = arith.constant 0 : index
    %c0_31 = arith.constant 0 : index
    %c0_32 = arith.constant 0 : index
    %84 = vector.load %arg7[%c0_30, %c0_31, %c0_32] : memref<2x32x32xf32, #tpu.memory_space<vmem>>, vector<1x32x32xf32>
    %85 = vector.shape_cast %84 : vector<1x32x32xf32> to vector<32x32xf32>
    %c0_33 = arith.constant 0 : index
    %c0_34 = arith.constant 0 : index
    %c0_35 = arith.constant 0 : index
    %86 = vector.load %arg8[%c0_33, %c0_34, %c0_35] : memref<2x1x32xf32, #tpu.memory_space<vmem>>, vector<1x1x32xf32>
    %87 = vector.shape_cast %86 : vector<1x1x32xf32> to vector<1x32xf32>
    %88 = arith.truncf %83 : vector<8x32xf32> to vector<8x32xbf16>
    %89 = arith.truncf %85 : vector<32x32xf32> to vector<32x32xbf16>
    %cst_36 = arith.constant dense<0.000000e+00> : vector<8x32xf32>
    %90 = tpu.matmul %88, %89, %cst_36 {dimension_numbers = #tpu.dot_dimension_numbers<[1], [0], [0], [1], [0, 0, 1, 1], [], []>} : vector<8x32xbf16>, vector<32x32xbf16>, vector<8x32xf32> -> vector<8x32xf32>
    %91 = vector.broadcast %87 : vector<1x32xf32> to vector<8x32xf32>
    %92 = arith.addf %90, %91 : vector<8x32xf32>
    %93 = arith.addf %92, %25 : vector<8x32xf32>
    %c0_37 = arith.constant 0 : index
    %c0_38 = arith.constant 0 : index
    %c0_39 = arith.constant 0 : index
    %94 = vector.load %arg9[%c0_37, %c0_38, %c0_39] : memref<2x1x32xf32, #tpu.memory_space<vmem>>, vector<1x1x32xf32>
    %95 = vector.shape_cast %94 : vector<1x1x32xf32> to vector<1x32xf32>
    %c0_40 = arith.constant 0 : index
    %c0_41 = arith.constant 0 : index
    %c0_42 = arith.constant 0 : index
    %96 = vector.load %arg10[%c0_40, %c0_41, %c0_42] : memref<2x1x32xf32, #tpu.memory_space<vmem>>, vector<1x1x32xf32>
    %97 = vector.shape_cast %96 : vector<1x1x32xf32> to vector<1x32xf32>
    %cst_43 = arith.constant dense<0.000000e+00> : vector<8xf32>
    %98 = vector.multi_reduction <add>, %93, %cst_43 [1] : vector<8x32xf32> to vector<8xf32>
    %99 = vector.shape_cast %98 : vector<8xf32> to vector<8x1xf32>
    %cst_44 = arith.constant 3.200000e+01 : f32
    %100 = vector.broadcast %cst_44 : f32 to vector<8x1xf32>
    %101 = arith.divf %99, %100 : vector<8x1xf32>
    %102 = vector.broadcast %101 : vector<8x1xf32> to vector<8x32xf32>
    %103 = arith.subf %93, %102 : vector<8x32xf32>
    %104 = arith.mulf %103, %103 : vector<8x32xf32>
    %cst_45 = arith.constant dense<0.000000e+00> : vector<8xf32>
    %105 = vector.multi_reduction <add>, %104, %cst_45 [1] : vector<8x32xf32> to vector<8xf32>
    %106 = vector.shape_cast %105 : vector<8xf32> to vector<8x1xf32>
    %cst_46 = arith.constant 3.200000e+01 : f32
    %107 = vector.broadcast %cst_46 : f32 to vector<8x1xf32>
    %108 = arith.divf %106, %107 : vector<8x1xf32>
    %cst_47 = arith.constant 9.99999996E-13 : f32
    %109 = vector.broadcast %cst_47 : f32 to vector<8x1xf32>
    %110 = arith.addf %108, %109 : vector<8x1xf32>
    %111 = math.rsqrt %110 : vector<8x1xf32>
    %112 = vector.broadcast %111 : vector<8x1xf32> to vector<8x32xf32>
    %113 = arith.mulf %103, %112 : vector<8x32xf32>
    %114 = vector.broadcast %95 : vector<1x32xf32> to vector<8x32xf32>
    %115 = arith.mulf %113, %114 : vector<8x32xf32>
    %116 = vector.broadcast %97 : vector<1x32xf32> to vector<8x32xf32>
    %117 = arith.addf %115, %116 : vector<8x32xf32>
    %c0_48 = arith.constant 0 : index
    %c0_49 = arith.constant 0 : index
    %c0_50 = arith.constant 0 : index
    %118 = vector.load %arg11[%c0_48, %c0_49, %c0_50] : memref<2x32x64xf32, #tpu.memory_space<vmem>>, vector<1x32x64xf32>
    %119 = vector.shape_cast %118 : vector<1x32x64xf32> to vector<32x64xf32>
    %c0_51 = arith.constant 0 : index
    %c0_52 = arith.constant 0 : index
    %c0_53 = arith.constant 0 : index
    %120 = vector.load %arg12[%c0_51, %c0_52, %c0_53] : memref<2x1x64xf32, #tpu.memory_space<vmem>>, vector<1x1x64xf32>
    %121 = vector.shape_cast %120 : vector<1x1x64xf32> to vector<1x64xf32>
    %122 = arith.truncf %117 : vector<8x32xf32> to vector<8x32xbf16>
    %123 = arith.truncf %119 : vector<32x64xf32> to vector<32x64xbf16>
    %cst_54 = arith.constant dense<0.000000e+00> : vector<8x64xf32>
    %124 = tpu.matmul %122, %123, %cst_54 {dimension_numbers = #tpu.dot_dimension_numbers<[1], [0], [0], [1], [0, 0, 1, 1], [], []>} : vector<8x32xbf16>, vector<32x64xbf16>, vector<8x64xf32> -> vector<8x64xf32>
    %125 = vector.broadcast %121 : vector<1x64xf32> to vector<8x64xf32>
    %126 = arith.addf %124, %125 : vector<8x64xf32>
    %cst_55 = arith.constant 5.000000e-01 : f32
    %127 = vector.broadcast %cst_55 : f32 to vector<8x64xf32>
    %128 = arith.mulf %127, %126 : vector<8x64xf32>
    %cst_56 = arith.constant 4.471500e-02 : f32
    %129 = vector.broadcast %cst_56 : f32 to vector<8x64xf32>
    %130 = arith.mulf %129, %126 : vector<8x64xf32>
    %131 = arith.mulf %130, %126 : vector<8x64xf32>
    %132 = arith.mulf %131, %126 : vector<8x64xf32>
    %133 = arith.addf %126, %132 : vector<8x64xf32>
    %cst_57 = arith.constant 0.797884583 : f32
    %134 = vector.broadcast %cst_57 : f32 to vector<8x64xf32>
    %135 = arith.mulf %134, %133 : vector<8x64xf32>
    %136 = math.tanh %135 : vector<8x64xf32>
    %cst_58 = arith.constant 1.000000e+00 : f32
    %137 = vector.broadcast %cst_58 : f32 to vector<8x64xf32>
    %138 = arith.addf %137, %136 : vector<8x64xf32>
    %139 = arith.mulf %128, %138 : vector<8x64xf32>
    %c0_59 = arith.constant 0 : index
    %c0_60 = arith.constant 0 : index
    %c0_61 = arith.constant 0 : index
    %140 = vector.load %arg13[%c0_59, %c0_60, %c0_61] : memref<2x64x32xf32, #tpu.memory_space<vmem>>, vector<1x64x32xf32>
    %141 = vector.shape_cast %140 : vector<1x64x32xf32> to vector<64x32xf32>
    %c0_62 = arith.constant 0 : index
    %c0_63 = arith.constant 0 : index
    %c0_64 = arith.constant 0 : index
    %142 = vector.load %arg14[%c0_62, %c0_63, %c0_64] : memref<2x1x32xf32, #tpu.memory_space<vmem>>, vector<1x1x32xf32>
    %143 = vector.shape_cast %142 : vector<1x1x32xf32> to vector<1x32xf32>
    %144 = arith.truncf %139 : vector<8x64xf32> to vector<8x64xbf16>
    %145 = arith.truncf %141 : vector<64x32xf32> to vector<64x32xbf16>
    %cst_65 = arith.constant dense<0.000000e+00> : vector<8x32xf32>
    %146 = tpu.matmul %144, %145, %cst_65 {dimension_numbers = #tpu.dot_dimension_numbers<[1], [0], [0], [1], [0, 0, 1, 1], [], []>} : vector<8x64xbf16>, vector<64x32xbf16>, vector<8x32xf32> -> vector<8x32xf32>
    %147 = vector.broadcast %143 : vector<1x32xf32> to vector<8x32xf32>
    %148 = arith.addf %146, %147 : vector<8x32xf32>
    %149 = arith.addf %148, %117 : vector<8x32xf32>
    %c0_66 = arith.constant 0 : index
    %c0_67 = arith.constant 0 : index
    %c0_68 = arith.constant 0 : index
    %150 = vector.load %arg15[%c0_66, %c0_67, %c0_68] : memref<2x1x32xf32, #tpu.memory_space<vmem>>, vector<1x1x32xf32>
    %151 = vector.shape_cast %150 : vector<1x1x32xf32> to vector<1x32xf32>
    %c0_69 = arith.constant 0 : index
    %c0_70 = arith.constant 0 : index
    %c0_71 = arith.constant 0 : index
    %152 = vector.load %arg16[%c0_69, %c0_70, %c0_71] : memref<2x1x32xf32, #tpu.memory_space<vmem>>, vector<1x1x32xf32>
    %153 = vector.shape_cast %152 : vector<1x1x32xf32> to vector<1x32xf32>
    %cst_72 = arith.constant dense<0.000000e+00> : vector<8xf32>
    %154 = vector.multi_reduction <add>, %149, %cst_72 [1] : vector<8x32xf32> to vector<8xf32>
    %155 = vector.shape_cast %154 : vector<8xf32> to vector<8x1xf32>
    %cst_73 = arith.constant 3.200000e+01 : f32
    %156 = vector.broadcast %cst_73 : f32 to vector<8x1xf32>
    %157 = arith.divf %155, %156 : vector<8x1xf32>
    %158 = vector.broadcast %157 : vector<8x1xf32> to vector<8x32xf32>
    %159 = arith.subf %149, %158 : vector<8x32xf32>
    %160 = arith.mulf %159, %159 : vector<8x32xf32>
    %cst_74 = arith.constant dense<0.000000e+00> : vector<8xf32>
    %161 = vector.multi_reduction <add>, %160, %cst_74 [1] : vector<8x32xf32> to vector<8xf32>
    %162 = vector.shape_cast %161 : vector<8xf32> to vector<8x1xf32>
    %cst_75 = arith.constant 3.200000e+01 : f32
    %163 = vector.broadcast %cst_75 : f32 to vector<8x1xf32>
    %164 = arith.divf %162, %163 : vector<8x1xf32>
    %cst_76 = arith.constant 9.99999996E-13 : f32
    %165 = vector.broadcast %cst_76 : f32 to vector<8x1xf32>
    %166 = arith.addf %164, %165 : vector<8x1xf32>
    %167 = math.rsqrt %166 : vector<8x1xf32>
    %168 = vector.broadcast %167 : vector<8x1xf32> to vector<8x32xf32>
    %169 = arith.mulf %159, %168 : vector<8x32xf32>
    %170 = vector.broadcast %151 : vector<1x32xf32> to vector<8x32xf32>
    %171 = arith.mulf %169, %170 : vector<8x32xf32>
    %172 = vector.broadcast %153 : vector<1x32xf32> to vector<8x32xf32>
    %173 = arith.addf %171, %172 : vector<8x32xf32>
    %c1 = arith.constant 1 : index
    %c0_77 = arith.constant 0 : index
    %c0_78 = arith.constant 0 : index
    %174 = vector.load %arg5[%c1, %c0_77, %c0_78] : memref<2x32x96xf32, #tpu.memory_space<vmem>>, vector<1x32x96xf32>
    %175 = vector.shape_cast %174 : vector<1x32x96xf32> to vector<32x96xf32>
    %c1_79 = arith.constant 1 : index
    %c0_80 = arith.constant 0 : index
    %c0_81 = arith.constant 0 : index
    %176 = vector.load %arg6[%c1_79, %c0_80, %c0_81] : memref<2x1x96xf32, #tpu.memory_space<vmem>>, vector<1x1x96xf32>
    %177 = vector.shape_cast %176 : vector<1x1x96xf32> to vector<1x96xf32>
    %178 = arith.truncf %173 : vector<8x32xf32> to vector<8x32xbf16>
    %179 = arith.truncf %175 : vector<32x96xf32> to vector<32x96xbf16>
    %cst_82 = arith.constant dense<0.000000e+00> : vector<8x96xf32>
    %180 = tpu.matmul %178, %179, %cst_82 {dimension_numbers = #tpu.dot_dimension_numbers<[1], [0], [0], [1], [0, 0, 1, 1], [], []>} : vector<8x32xbf16>, vector<32x96xbf16>, vector<8x96xf32> -> vector<8x96xf32>
    %181 = vector.broadcast %177 : vector<1x96xf32> to vector<8x96xf32>
    %182 = arith.addf %180, %181 : vector<8x96xf32>
    %183 = vector.extract_strided_slice %182 {offsets = [0, 0], sizes = [8, 16], strides = [1, 1]} : vector<8x96xf32> to vector<8x16xf32>
    %184 = vector.extract_strided_slice %182 {offsets = [0, 32], sizes = [8, 16], strides = [1, 1]} : vector<8x96xf32> to vector<8x16xf32>
    %185 = vector.extract_strided_slice %182 {offsets = [0, 64], sizes = [8, 16], strides = [1, 1]} : vector<8x96xf32> to vector<8x16xf32>
    %186 = arith.truncf %183 : vector<8x16xf32> to vector<8x16xbf16>
    %187 = tpu.transpose %184, [1, 0] : vector<8x16xf32> -> vector<16x8xf32>
    %188 = arith.truncf %187 : vector<16x8xf32> to vector<16x8xbf16>
    %cst_83 = arith.constant dense<0.000000e+00> : vector<8x8xf32>
    %189 = tpu.matmul %186, %188, %cst_83 {dimension_numbers = #tpu.dot_dimension_numbers<[1], [0], [0], [1], [0, 0, 1, 1], [], []>} : vector<8x16xbf16>, vector<16x8xbf16>, vector<8x8xf32> -> vector<8x8xf32>
    %cst_84 = arith.constant 2.500000e-01 : f32
    %190 = vector.broadcast %cst_84 : f32 to vector<8x8xf32>
    %191 = arith.mulf %189, %190 : vector<8x8xf32>
    %192 = vector.broadcast %1 : vector<1x8xf32> to vector<8x8xf32>
    %193 = arith.addf %191, %192 : vector<8x8xf32>
    %cst_85 = arith.constant dense<0xFF800000> : vector<8xf32>
    %194 = vector.multi_reduction <maximumf>, %193, %cst_85 [1] : vector<8x8xf32> to vector<8xf32>
    %195 = vector.shape_cast %194 : vector<8xf32> to vector<8x1xf32>
    %196 = vector.broadcast %195 : vector<8x1xf32> to vector<8x8xf32>
    %197 = arith.subf %193, %196 : vector<8x8xf32>
    %198 = math.exp %197 : vector<8x8xf32>
    %cst_86 = arith.constant dense<0.000000e+00> : vector<8xf32>
    %199 = vector.multi_reduction <add>, %198, %cst_86 [1] : vector<8x8xf32> to vector<8xf32>
    %200 = vector.shape_cast %199 : vector<8xf32> to vector<8x1xf32>
    %201 = tpu.reciprocal %200 {approx = true} : vector<8x1xf32> -> vector<8x1xf32>
    %202 = vector.broadcast %201 : vector<8x1xf32> to vector<8x8xf32>
    %203 = arith.mulf %198, %202 : vector<8x8xf32>
    %204 = arith.truncf %203 : vector<8x8xf32> to vector<8x8xbf16>
    %205 = arith.truncf %185 : vector<8x16xf32> to vector<8x16xbf16>
    %cst_87 = arith.constant dense<0.000000e+00> : vector<8x16xf32>
    %206 = tpu.matmul %204, %205, %cst_87 {dimension_numbers = #tpu.dot_dimension_numbers<[1], [0], [0], [1], [0, 0, 1, 1], [], []>} : vector<8x8xbf16>, vector<8x16xbf16>, vector<8x16xf32> -> vector<8x16xf32>
    %207 = vector.extract_strided_slice %182 {offsets = [0, 16], sizes = [8, 16], strides = [1, 1]} : vector<8x96xf32> to vector<8x16xf32>
    %208 = vector.extract_strided_slice %182 {offsets = [0, 48], sizes = [8, 16], strides = [1, 1]} : vector<8x96xf32> to vector<8x16xf32>
    %209 = vector.extract_strided_slice %182 {offsets = [0, 80], sizes = [8, 16], strides = [1, 1]} : vector<8x96xf32> to vector<8x16xf32>
    %210 = arith.truncf %207 : vector<8x16xf32> to vector<8x16xbf16>
    %211 = tpu.transpose %208, [1, 0] : vector<8x16xf32> -> vector<16x8xf32>
    %212 = arith.truncf %211 : vector<16x8xf32> to vector<16x8xbf16>
    %cst_88 = arith.constant dense<0.000000e+00> : vector<8x8xf32>
    %213 = tpu.matmul %210, %212, %cst_88 {dimension_numbers = #tpu.dot_dimension_numbers<[1], [0], [0], [1], [0, 0, 1, 1], [], []>} : vector<8x16xbf16>, vector<16x8xbf16>, vector<8x8xf32> -> vector<8x8xf32>
    %cst_89 = arith.constant 2.500000e-01 : f32
    %214 = vector.broadcast %cst_89 : f32 to vector<8x8xf32>
    %215 = arith.mulf %213, %214 : vector<8x8xf32>
    %216 = vector.broadcast %1 : vector<1x8xf32> to vector<8x8xf32>
    %217 = arith.addf %215, %216 : vector<8x8xf32>
    %cst_90 = arith.constant dense<0xFF800000> : vector<8xf32>
    %218 = vector.multi_reduction <maximumf>, %217, %cst_90 [1] : vector<8x8xf32> to vector<8xf32>
    %219 = vector.shape_cast %218 : vector<8xf32> to vector<8x1xf32>
    %220 = vector.broadcast %219 : vector<8x1xf32> to vector<8x8xf32>
    %221 = arith.subf %217, %220 : vector<8x8xf32>
    %222 = math.exp %221 : vector<8x8xf32>
    %cst_91 = arith.constant dense<0.000000e+00> : vector<8xf32>
    %223 = vector.multi_reduction <add>, %222, %cst_91 [1] : vector<8x8xf32> to vector<8xf32>
    %224 = vector.shape_cast %223 : vector<8xf32> to vector<8x1xf32>
    %225 = tpu.reciprocal %224 {approx = true} : vector<8x1xf32> -> vector<8x1xf32>
    %226 = vector.broadcast %225 : vector<8x1xf32> to vector<8x8xf32>
    %227 = arith.mulf %222, %226 : vector<8x8xf32>
    %228 = arith.truncf %227 : vector<8x8xf32> to vector<8x8xbf16>
    %229 = arith.truncf %209 : vector<8x16xf32> to vector<8x16xbf16>
    %cst_92 = arith.constant dense<0.000000e+00> : vector<8x16xf32>
    %230 = tpu.matmul %228, %229, %cst_92 {dimension_numbers = #tpu.dot_dimension_numbers<[1], [0], [0], [1], [0, 0, 1, 1], [], []>} : vector<8x8xbf16>, vector<8x16xbf16>, vector<8x16xf32> -> vector<8x16xf32>
    %231 = tpu.concatenate %206, %230 in 1 : vector<8x16xf32>, vector<8x16xf32> -> vector<8x32xf32>
    %c1_93 = arith.constant 1 : index
    %c0_94 = arith.constant 0 : index
    %c0_95 = arith.constant 0 : index
    %232 = vector.load %arg7[%c1_93, %c0_94, %c0_95] : memref<2x32x32xf32, #tpu.memory_space<vmem>>, vector<1x32x32xf32>
    %233 = vector.shape_cast %232 : vector<1x32x32xf32> to vector<32x32xf32>
    %c1_96 = arith.constant 1 : index
    %c0_97 = arith.constant 0 : index
    %c0_98 = arith.constant 0 : index
    %234 = vector.load %arg8[%c1_96, %c0_97, %c0_98] : memref<2x1x32xf32, #tpu.memory_space<vmem>>, vector<1x1x32xf32>
    %235 = vector.shape_cast %234 : vector<1x1x32xf32> to vector<1x32xf32>
    %236 = arith.truncf %231 : vector<8x32xf32> to vector<8x32xbf16>
    %237 = arith.truncf %233 : vector<32x32xf32> to vector<32x32xbf16>
    %cst_99 = arith.constant dense<0.000000e+00> : vector<8x32xf32>
    %238 = tpu.matmul %236, %237, %cst_99 {dimension_numbers = #tpu.dot_dimension_numbers<[1], [0], [0], [1], [0, 0, 1, 1], [], []>} : vector<8x32xbf16>, vector<32x32xbf16>, vector<8x32xf32> -> vector<8x32xf32>
    %239 = vector.broadcast %235 : vector<1x32xf32> to vector<8x32xf32>
    %240 = arith.addf %238, %239 : vector<8x32xf32>
    %241 = arith.addf %240, %173 : vector<8x32xf32>
    %c1_100 = arith.constant 1 : index
    %c0_101 = arith.constant 0 : index
    %c0_102 = arith.constant 0 : index
    %242 = vector.load %arg9[%c1_100, %c0_101, %c0_102] : memref<2x1x32xf32, #tpu.memory_space<vmem>>, vector<1x1x32xf32>
    %243 = vector.shape_cast %242 : vector<1x1x32xf32> to vector<1x32xf32>
    %c1_103 = arith.constant 1 : index
    %c0_104 = arith.constant 0 : index
    %c0_105 = arith.constant 0 : index
    %244 = vector.load %arg10[%c1_103, %c0_104, %c0_105] : memref<2x1x32xf32, #tpu.memory_space<vmem>>, vector<1x1x32xf32>
    %245 = vector.shape_cast %244 : vector<1x1x32xf32> to vector<1x32xf32>
    %cst_106 = arith.constant dense<0.000000e+00> : vector<8xf32>
    %246 = vector.multi_reduction <add>, %241, %cst_106 [1] : vector<8x32xf32> to vector<8xf32>
    %247 = vector.shape_cast %246 : vector<8xf32> to vector<8x1xf32>
    %cst_107 = arith.constant 3.200000e+01 : f32
    %248 = vector.broadcast %cst_107 : f32 to vector<8x1xf32>
    %249 = arith.divf %247, %248 : vector<8x1xf32>
    %250 = vector.broadcast %249 : vector<8x1xf32> to vector<8x32xf32>
    %251 = arith.subf %241, %250 : vector<8x32xf32>
    %252 = arith.mulf %251, %251 : vector<8x32xf32>
    %cst_108 = arith.constant dense<0.000000e+00> : vector<8xf32>
    %253 = vector.multi_reduction <add>, %252, %cst_108 [1] : vector<8x32xf32> to vector<8xf32>
    %254 = vector.shape_cast %253 : vector<8xf32> to vector<8x1xf32>
    %cst_109 = arith.constant 3.200000e+01 : f32
    %255 = vector.broadcast %cst_109 : f32 to vector<8x1xf32>
    %256 = arith.divf %254, %255 : vector<8x1xf32>
    %cst_110 = arith.constant 9.99999996E-13 : f32
    %257 = vector.broadcast %cst_110 : f32 to vector<8x1xf32>
    %258 = arith.addf %256, %257 : vector<8x1xf32>
    %259 = math.rsqrt %258 : vector<8x1xf32>
    %260 = vector.broadcast %259 : vector<8x1xf32> to vector<8x32xf32>
    %261 = arith.mulf %251, %260 : vector<8x32xf32>
    %262 = vector.broadcast %243 : vector<1x32xf32> to vector<8x32xf32>
    %263 = arith.mulf %261, %262 : vector<8x32xf32>
    %264 = vector.broadcast %245 : vector<1x32xf32> to vector<8x32xf32>
    %265 = arith.addf %263, %264 : vector<8x32xf32>
    %c1_111 = arith.constant 1 : index
    %c0_112 = arith.constant 0 : index
    %c0_113 = arith.constant 0 : index
    %266 = vector.load %arg11[%c1_111, %c0_112, %c0_113] : memref<2x32x64xf32, #tpu.memory_space<vmem>>, vector<1x32x64xf32>
    %267 = vector.shape_cast %266 : vector<1x32x64xf32> to vector<32x64xf32>
    %c1_114 = arith.constant 1 : index
    %c0_115 = arith.constant 0 : index
    %c0_116 = arith.constant 0 : index
    %268 = vector.load %arg12[%c1_114, %c0_115, %c0_116] : memref<2x1x64xf32, #tpu.memory_space<vmem>>, vector<1x1x64xf32>
    %269 = vector.shape_cast %268 : vector<1x1x64xf32> to vector<1x64xf32>
    %270 = arith.truncf %265 : vector<8x32xf32> to vector<8x32xbf16>
    %271 = arith.truncf %267 : vector<32x64xf32> to vector<32x64xbf16>
    %cst_117 = arith.constant dense<0.000000e+00> : vector<8x64xf32>
    %272 = tpu.matmul %270, %271, %cst_117 {dimension_numbers = #tpu.dot_dimension_numbers<[1], [0], [0], [1], [0, 0, 1, 1], [], []>} : vector<8x32xbf16>, vector<32x64xbf16>, vector<8x64xf32> -> vector<8x64xf32>
    %273 = vector.broadcast %269 : vector<1x64xf32> to vector<8x64xf32>
    %274 = arith.addf %272, %273 : vector<8x64xf32>
    %cst_118 = arith.constant 5.000000e-01 : f32
    %275 = vector.broadcast %cst_118 : f32 to vector<8x64xf32>
    %276 = arith.mulf %275, %274 : vector<8x64xf32>
    %cst_119 = arith.constant 4.471500e-02 : f32
    %277 = vector.broadcast %cst_119 : f32 to vector<8x64xf32>
    %278 = arith.mulf %277, %274 : vector<8x64xf32>
    %279 = arith.mulf %278, %274 : vector<8x64xf32>
    %280 = arith.mulf %279, %274 : vector<8x64xf32>
    %281 = arith.addf %274, %280 : vector<8x64xf32>
    %cst_120 = arith.constant 0.797884583 : f32
    %282 = vector.broadcast %cst_120 : f32 to vector<8x64xf32>
    %283 = arith.mulf %282, %281 : vector<8x64xf32>
    %284 = math.tanh %283 : vector<8x64xf32>
    %cst_121 = arith.constant 1.000000e+00 : f32
    %285 = vector.broadcast %cst_121 : f32 to vector<8x64xf32>
    %286 = arith.addf %285, %284 : vector<8x64xf32>
    %287 = arith.mulf %276, %286 : vector<8x64xf32>
    %c1_122 = arith.constant 1 : index
    %c0_123 = arith.constant 0 : index
    %c0_124 = arith.constant 0 : index
    %288 = vector.load %arg13[%c1_122, %c0_123, %c0_124] : memref<2x64x32xf32, #tpu.memory_space<vmem>>, vector<1x64x32xf32>
    %289 = vector.shape_cast %288 : vector<1x64x32xf32> to vector<64x32xf32>
    %c1_125 = arith.constant 1 : index
    %c0_126 = arith.constant 0 : index
    %c0_127 = arith.constant 0 : index
    %290 = vector.load %arg14[%c1_125, %c0_126, %c0_127] : memref<2x1x32xf32, #tpu.memory_space<vmem>>, vector<1x1x32xf32>
    %291 = vector.shape_cast %290 : vector<1x1x32xf32> to vector<1x32xf32>
    %292 = arith.truncf %287 : vector<8x64xf32> to vector<8x64xbf16>
    %293 = arith.truncf %289 : vector<64x32xf32> to vector<64x32xbf16>
    %cst_128 = arith.constant dense<0.000000e+00> : vector<8x32xf32>
    %294 = tpu.matmul %292, %293, %cst_128 {dimension_numbers = #tpu.dot_dimension_numbers<[1], [0], [0], [1], [0, 0, 1, 1], [], []>} : vector<8x64xbf16>, vector<64x32xbf16>, vector<8x32xf32> -> vector<8x32xf32>
    %295 = vector.broadcast %291 : vector<1x32xf32> to vector<8x32xf32>
    %296 = arith.addf %294, %295 : vector<8x32xf32>
    %297 = arith.addf %296, %265 : vector<8x32xf32>
    %c1_129 = arith.constant 1 : index
    %c0_130 = arith.constant 0 : index
    %c0_131 = arith.constant 0 : index
    %298 = vector.load %arg15[%c1_129, %c0_130, %c0_131] : memref<2x1x32xf32, #tpu.memory_space<vmem>>, vector<1x1x32xf32>
    %299 = vector.shape_cast %298 : vector<1x1x32xf32> to vector<1x32xf32>
    %c1_132 = arith.constant 1 : index
    %c0_133 = arith.constant 0 : index
    %c0_134 = arith.constant 0 : index
    %300 = vector.load %arg16[%c1_132, %c0_133, %c0_134] : memref<2x1x32xf32, #tpu.memory_space<vmem>>, vector<1x1x32xf32>
    %301 = vector.shape_cast %300 : vector<1x1x32xf32> to vector<1x32xf32>
    %cst_135 = arith.constant dense<0.000000e+00> : vector<8xf32>
    %302 = vector.multi_reduction <add>, %297, %cst_135 [1] : vector<8x32xf32> to vector<8xf32>
    %303 = vector.shape_cast %302 : vector<8xf32> to vector<8x1xf32>
    %cst_136 = arith.constant 3.200000e+01 : f32
    %304 = vector.broadcast %cst_136 : f32 to vector<8x1xf32>
    %305 = arith.divf %303, %304 : vector<8x1xf32>
    %306 = vector.broadcast %305 : vector<8x1xf32> to vector<8x32xf32>
    %307 = arith.subf %297, %306 : vector<8x32xf32>
    %308 = arith.mulf %307, %307 : vector<8x32xf32>
    %cst_137 = arith.constant dense<0.000000e+00> : vector<8xf32>
    %309 = vector.multi_reduction <add>, %308, %cst_137 [1] : vector<8x32xf32> to vector<8xf32>
    %310 = vector.shape_cast %309 : vector<8xf32> to vector<8x1xf32>
    %cst_138 = arith.constant 3.200000e+01 : f32
    %311 = vector.broadcast %cst_138 : f32 to vector<8x1xf32>
    %312 = arith.divf %310, %311 : vector<8x1xf32>
    %cst_139 = arith.constant 9.99999996E-13 : f32
    %313 = vector.broadcast %cst_139 : f32 to vector<8x1xf32>
    %314 = arith.addf %312, %313 : vector<8x1xf32>
    %315 = math.rsqrt %314 : vector<8x1xf32>
    %316 = vector.broadcast %315 : vector<8x1xf32> to vector<8x32xf32>
    %317 = arith.mulf %307, %316 : vector<8x32xf32>
    %318 = vector.broadcast %299 : vector<1x32xf32> to vector<8x32xf32>
    %319 = arith.mulf %317, %318 : vector<8x32xf32>
    %320 = vector.broadcast %301 : vector<1x32xf32> to vector<8x32xf32>
    %321 = arith.addf %319, %320 : vector<8x32xf32>
    %322 = vector.extract_strided_slice %321 {offsets = [0, 0], sizes = [1, 32], strides = [1, 1]} : vector<8x32xf32> to vector<1x32xf32>
    %c0_140 = arith.constant 0 : index
    %c0_141 = arith.constant 0 : index
    %c0_142 = arith.constant 0 : index
    %323 = vector.load %arg17[%c0_140, %c0_141, %c0_142] : memref<1x1x32xf32, #tpu.memory_space<vmem>>, vector<1x1x32xf32>
    %324 = vector.shape_cast %323 : vector<1x1x32xf32> to vector<1x32xf32>
    %325 = vector.shape_cast %322 : vector<1x32xf32> to vector<1x1x32xf32>
    tpu.vector_store %arg17[%c0_140, %c0_141, %c0_142], %325 {strides = array<i32>} : memref<1x1x32xf32, #tpu.memory_space<vmem>>, vector<1x1x32xf32>,
    return
  }
  func.func @transform_0(%arg0: i32) -> (i32, i32, i32) {
    %c0_i32 = arith.constant 0 : i32
    %c0_i32_0 = arith.constant 0 : i32
    %c0_i32_1 = arith.constant 0 : i32
    return %arg0, %c0_i32, %c0_i32_0 : i32, i32, i32
  }
  func.func @transform_1(%arg0: i32) -> (i32, i32, i32) {
    %c0_i32 = arith.constant 0 : i32
    %c0_i32_0 = arith.constant 0 : i32
    %c0_i32_1 = arith.constant 0 : i32
    return %arg0, %c0_i32, %c0_i32_0 : i32, i32, i32
  }
  func.func @transform_2(%arg0: i32) -> (i32, i32) {
    %c0_i32 = arith.constant 0 : i32
    %c0_i32_0 = arith.constant 0 : i32
    %c0_i32_1 = arith.constant 0 : i32
    return %c0_i32, %c0_i32_0 : i32, i32
  }
  func.func @transform_3(%arg0: i32) -> (i32, i32) {
    %c0_i32 = arith.constant 0 : i32
    %c0_i32_0 = arith.constant 0 : i32
    %c0_i32_1 = arith.constant 0 : i32
    return %c0_i32, %c0_i32_0 : i32, i32
  }
  func.func @transform_4(%arg0: i32) -> (i32, i32, i32) {
    %c0_i32 = arith.constant 0 : i32
    %c0_i32_0 = arith.constant 0 : i32
    %c0_i32_1 = arith.constant 0 : i32
    %c0_i32_2 = arith.constant 0 : i32
    return %c0_i32, %c0_i32_0, %c0_i32_1 : i32, i32, i32
  }
  func.func @transform_5(%arg0: i32) -> (i32, i32, i32) {
    %c0_i32 = arith.constant 0 : i32
    %c0_i32_0 = arith.constant 0 : i32
    %c0_i32_1 = arith.constant 0 : i32
    %c0_i32_2 = arith.constant 0 : i32
    return %c0_i32, %c0_i32_0, %c0_i32_1 : i32, i32, i32
  }
  func.func @transform_6(%arg0: i32) -> (i32, i32, i32) {
    %c0_i32 = arith.constant 0 : i32
    %c0_i32_0 = arith.constant 0 : i32
    %c0_i32_1 = arith.constant 0 : i32
    %c0_i32_2 = arith.constant 0 : i32
    return %c0_i32, %c0_i32_0, %c0_i32_1 : i32, i32, i32
  }
  func.func @transform_7(%arg0: i32) -> (i32, i32, i32) {
    %c0_i32 = arith.constant 0 : i32
    %c0_i32_0 = arith.constant 0 : i32
    %c0_i32_1 = arith.constant 0 : i32
    %c0_i32_2 = arith.constant 0 : i32
    return %c0_i32, %c0_i32_0, %c0_i32_1 : i32, i32, i32
  }
  func.func @transform_8(%arg0: i32) -> (i32, i32, i32) {
    %c0_i32 = arith.constant 0 : i32
    %c0_i32_0 = arith.constant 0 : i32
    %c0_i32_1 = arith.constant 0 : i32
    %c0_i32_2 = arith.constant 0 : i32
    return %c0_i32, %c0_i32_0, %c0_i32_1 : i32, i32, i32
  }
  func.func @transform_9(%arg0: i32) -> (i32, i32, i32) {
    %c0_i32 = arith.constant 0 : i32
    %c0_i32_0 = arith.constant 0 : i32
    %c0_i32_1 = arith.constant 0 : i32
    %c0_i32_2 = arith.constant 0 : i32
    return %c0_i32, %c0_i32_0, %c0_i32_1 : i32, i32, i32
  }
  func.func @transform_10(%arg0: i32) -> (i32, i32, i32) {
    %c0_i32 = arith.constant 0 : i32
    %c0_i32_0 = arith.constant 0 : i32
    %c0_i32_1 = arith.constant 0 : i32
    %c0_i32_2 = arith.constant 0 : i32
    return %c0_i32, %c0_i32_0, %c0_i32_1 : i32, i32, i32
  }
  func.func @transform_11(%arg0: i32) -> (i32, i32, i32) {
    %c0_i32 = arith.constant 0 : i32
    %c0_i32_0 = arith.constant 0 : i32
    %c0_i32_1 = arith.constant 0 : i32
    %c0_i32_2 = arith.constant 0 : i32
    return %c0_i32, %c0_i32_0, %c0_i32_1 : i32, i32, i32
  }
  func.func @transform_12(%arg0: i32) -> (i32, i32, i32) {
    %c0_i32 = arith.constant 0 : i32
    %c0_i32_0 = arith.constant 0 : i32
    %c0_i32_1 = arith.constant 0 : i32
    %c0_i32_2 = arith.constant 0 : i32
    return %c0_i32, %c0_i32_0, %c0_i32_1 : i32, i32, i32
  }
  func.func @transform_13(%arg0: i32) -> (i32, i32, i32) {
    %c0_i32 = arith.constant 0 : i32
    %c0_i32_0 = arith.constant 0 : i32
    %c0_i32_1 = arith.constant 0 : i32
    %c0_i32_2 = arith.constant 0 : i32
    return %c0_i32, %c0_i32_0, %c0_i32_1 : i32, i32, i32
  }
  func.func @transform_14(%arg0: i32) -> (i32, i32, i32) {
    %c0_i32 = arith.constant 0 : i32
    %c0_i32_0 = arith.constant 0 : i32
    %c0_i32_1 = arith.constant 0 : i32
    %c0_i32_2 = arith.constant 0 : i32
    return %c0_i32, %c0_i32_0, %c0_i32_1 : i32, i32, i32
  }
  func.func @transform_15(%arg0: i32) -> (i32, i32, i32) {
    %c0_i32 = arith.constant 0 : i32
    %c0_i32_0 = arith.constant 0 : i32
    %c0_i32_1 = arith.constant 0 : i32
    %c0_i32_2 = arith.constant 0 : i32
    return %c0_i32, %c0_i32_0, %c0_i32_1 : i32, i32, i32
  }
  func.func @transform_16(%arg0: i32) -> (i32, i32, i32) {
    %c0_i32 = arith.constant 0 : i32
    %c0_i32_0 = arith.constant 0 : i32
    %c0_i32_1 = arith.constant 0 : i32
    return %arg0, %c0_i32, %c0_i32_0 : i32, i32, i32
  }
}

</mosaic_0001>

<llo_original>
// kernel: bert_forward.1
$region0: #{bert_forward.1}
  #allocation0 [shape = 'u32[]', space=smem, size = 0x4, offset = 0x4, fixed_abs, tag = 'smem constant byte address 0x4 - core index']
  #allocation1 [shape = 'u32[144,128]{1,0:T(1,128)}', space=vmem, size = 0x12000, scoped, tag = 'internal scratch']
  %s0 = inlined_call_operand.vmem [shape: f32[2,8,32], index: 0, kind: input, shape index: {}]
  %s1 = inlined_call_operand.vmem [shape: f32[2,1,8], index: 1, kind: input, shape index: {}]
  %s2 = inlined_call_operand.vmem [shape: f32[1,32], index: 2, kind: input, shape index: {}]
  %s3 = inlined_call_operand.vmem [shape: f32[1,32], index: 3, kind: input, shape index: {}]
  %s4 = inlined_call_operand.vmem [shape: f32[2,32,96], index: 4, kind: input, shape index: {}]
  %s5 = inlined_call_operand.vmem [shape: f32[2,1,96], index: 5, kind: input, shape index: {}]
  %s6 = inlined_call_operand.vmem [shape: f32[2,32,32], index: 6, kind: input, shape index: {}]
  %s7 = inlined_call_operand.vmem [shape: f32[2,1,32], index: 7, kind: input, shape index: {}]
  %s8 = inlined_call_operand.vmem [shape: f32[2,1,32], index: 8, kind: input, shape index: {}]
  %s9 = inlined_call_operand.vmem [shape: f32[2,1,32], index: 9, kind: input, shape index: {}]
  %s10 = inlined_call_operand.vmem [shape: f32[2,32,64], index: 10, kind: input, shape index: {}]
  %s11 = inlined_call_operand.vmem [shape: f32[2,1,64], index: 11, kind: input, shape index: {}]
  %s12 = inlined_call_operand.vmem [shape: f32[2,64,32], index: 12, kind: input, shape index: {}]
  %s13 = inlined_call_operand.vmem [shape: f32[2,1,32], index: 13, kind: input, shape index: {}]
  %s14 = inlined_call_operand.vmem [shape: f32[2,1,32], index: 14, kind: input, shape index: {}]
  %s15 = inlined_call_operand.vmem [shape: f32[2,1,32], index: 15, kind: input, shape index: {}]
  %s16 = inlined_call_operand.hbm [shape: f32[2,1,32], index: 16, kind: output, shape index: {}]
  %s17 = sld [smem:[#allocation0]]
  $region97: #{bert_forward.1} parent=0
    _
  %s19 = ssub.s32 1, %s17
  %s20 = scalar_select 0, %s19, %s17
  $region1: #{bert_forward.1} parent=0
    #allocation2 [shape = 'u8[1024]{0}', space=vmem, size = 0x400, scoped, tag = 'output window, operand 0']
    #allocation3 [shape = 's32[2]{0}', space=sflag, size = 0x8, scoped, tag = 'scoped memory for bert_forward.1']
    %21 = vsyncpa [#allocation3], 0
    %s22 = scalar_lea.sflag [#allocation3], 1
    %23 = vsyncpa %s22, 0
    loop: start=0, step=1, limit=4
    $region2: #{bert_forward.1} parent=1 // loop_pre_header
      _
    $region3: #{bert_forward.1} parent=1 // loop_header
      %s25 = sphi 0, %s29
      %p26 = scmp.ge.s32.totalorder %s25, 4
      %s35 = sphi 0, %s37
      %s38 = sphi 0, %s35
      %s39 = sphi 0, %s38
      %s55 = sphi 0, %s39
      %s61 = sphi 0, %s63
      %s64 = sphi 0, %s61
      %s65 = sphi 0, %s64
      %s81 = sphi 0, %s65
      %s85 = sphi 0, %s85
      %s87 = sphi 0, %s85
      %s88 = sphi 0, %s87
      %s102 = sphi 0, %s88
      %s106 = sphi 0, %s106
      %s108 = sphi 0, %s106
      %s109 = sphi 0, %s108
      %s123 = sphi 0, %s109
      %s127 = sphi 0, %s127
      %s129 = sphi 0, %s127
      %s130 = sphi 0, %s129
      %s144 = sphi 0, %s130
      %s148 = sphi 0, %s148
      %s150 = sphi 0, %s148
      %s151 = sphi 0, %s150
      %s165 = sphi 0, %s151
      %s169 = sphi 0, %s169
      %s171 = sphi 0, %s169
      %s172 = sphi 0, %s171
      %s186 = sphi 0, %s172
      %s190 = sphi 0, %s190
      %s192 = sphi 0, %s190
      %s193 = sphi 0, %s192
      %s207 = sphi 0, %s193
      %s211 = sphi 0, %s211
      %s213 = sphi 0, %s211
      %s214 = sphi 0, %s213
      %s228 = sphi 0, %s214
      %s232 = sphi 0, %s232
      %s234 = sphi 0, %s232
      %s235 = sphi 0, %s234
      %s249 = sphi 0, %s235
      %s253 = sphi 0, %s253
      %s255 = sphi 0, %s253
      %s256 = sphi 0, %s255
      %s270 = sphi 0, %s256
      %s274 = sphi 0, %s274
      %s276 = sphi 0, %s274
      %s277 = sphi 0, %s276
      %s291 = sphi 0, %s277
      %s295 = sphi 0, %s295
      %s297 = sphi 0, %s295
      %s298 = sphi 0, %s297
      %s312 = sphi 0, %s298
      %s316 = sphi 0, %s316
      %s318 = sphi 0, %s316
      %s319 = sphi 0, %s318
      %s333 = sphi 0, %s319
      %s337 = sphi 0, %s337
      %s339 = sphi 0, %s337
      %s340 = sphi 0, %s339
      %s354 = sphi 0, %s340
      %s358 = sphi 0, %s358
      %s360 = sphi 0, %s358
      %s361 = sphi 0, %s360
      %s375 = sphi 0, %s361
      %s381 = sphi 0, %s383
      %s384 = sphi 0, %s381
      %s385 = sphi 0, %s384
      %s401 = sphi 0, %s385
    $region4: #{bert_forward.1} parent=1 // loop_header_branch
      %28 = sbr.rel (%p26) target = $region8
    $region5: #{bert_forward.1} parent=1 // loop_body
      %s30 = ssub.s32 %s25, 1
      %s31 = ssub.s32 %s25, 2
      %s32 = sadd.s32 %s25, 1
      %s33 = ssub.s32 %s25, %s32
      %p34 = scmp.eq.s32.totalorder %s33, 0
      %s36 = sadd.s32 %s35, 1
      %s37 = scalar_select %p34, %s35, %s36
      %p40 = pneg %p34
      %p41 = scmp.eq.s32.totalorder %s25, 1
      %p42 = por %p40, %p41
      %p43 = scmp.ne.s32.totalorder %s35, %s38
      %p44 = scmp.eq.s32.totalorder %s25, 0
      %p45 = por %p43, %p44
      %p46 = scmp.ne.s32.totalorder %s35, %s38
      %p47 = scmp.eq.s32.totalorder %s30, 1
      %p48 = por %p46, %p47
      %p49 = scmp.ne.s32.totalorder %s38, %s39
      %p50 = scmp.eq.s32.totalorder %s30, 0
      %p51 = por %p49, %p50
      %p52 = scmp.ne.s32.totalorder %s38, %s39
      %p53 = scmp.eq.s32.totalorder %s31, 1
      %p54 = por %p52, %p53
      %p56 = scmp.ne.s32.totalorder %s39, %s55
      %p57 = scmp.eq.s32.totalorder %s31, 0
      %p58 = por %p56, %p57
      %s59 = ssub.s32 %s25, %s32
      %p60 = scmp.eq.s32.totalorder %s59, 0
      %s62 = sadd.s32 %s61, 1
      %s63 = scalar_select %p60, %s61, %s62
      %p66 = pneg %p60
      %p67 = scmp.eq.s32.totalorder %s25, 1
      %p68 = por %p66, %p67
      %p69 = scmp.ne.s32.totalorder %s61, %s64
      %p70 = scmp.eq.s32.totalorder %s25, 0
      %p71 = por %p69, %p70
      %p72 = scmp.ne.s32.totalorder %s61, %s64
      %p73 = scmp.eq.s32.totalorder %s30, 1
      %p74 = por %p72, %p73
      %p75 = scmp.ne.s32.totalorder %s64, %s65
      %p76 = scmp.eq.s32.totalorder %s30, 0
      %p77 = por %p75, %p76
      %p78 = scmp.ne.s32.totalorder %s64, %s65
      %p79 = scmp.eq.s32.totalorder %s31, 1
      %p80 = por %p78, %p79
      %p82 = scmp.ne.s32.totalorder %s65, %s81
      %p83 = scmp.eq.s32.totalorder %s31, 0
      %p84 = por %p82, %p83
      %s86 = sadd.s32 %s85, 1
      %p89 = scmp.eq.s32.totalorder %s25, 1
      %p90 = scmp.ne.s32.totalorder %s85, %s87
      %p91 = scmp.eq.s32.totalorder %s25, 0
      %p92 = por %p90, %p91
      %p93 = scmp.ne.s32.totalorder %s85, %s87
      %p94 = scmp.eq.s32.totalorder %s30, 1
      %p95 = por %p93, %p94
      %p96 = scmp.ne.s32.totalorder %s87, %s88
      %p97 = scmp.eq.s32.totalorder %s30, 0
      %p98 = por %p96, %p97
      %p99 = scmp.ne.s32.totalorder %s87, %s88
      %p100 = scmp.eq.s32.totalorder %s31, 1
      %p101 = por %p99, %p100
      %p103 = scmp.ne.s32.totalorder %s88, %s102
      %p104 = scmp.eq.s32.totalorder %s31, 0
      %p105 = por %p103, %p104
      %s107 = sadd.s32 %s106, 1
      %p110 = scmp.eq.s32.totalorder %s25, 1
      %p111 = scmp.ne.s32.totalorder %s106, %s108
      %p112 = scmp.eq.s32.totalorder %s25, 0
      %p113 = por %p111, %p112
      %p114 = scmp.ne.s32.totalorder %s106, %s108
      %p115 = scmp.eq.s32.totalorder %s30, 1
      %p116 = por %p114, %p115
      %p117 = scmp.ne.s32.totalorder %s108, %s109
      %p118 = scmp.eq.s32.totalorder %s30, 0
      %p119 = por %p117, %p118
      %p120 = scmp.ne.s32.totalorder %s108, %s109
      %p121 = scmp.eq.s32.totalorder %s31, 1
      %p122 = por %p120, %p121
      %p124 = scmp.ne.s32.totalorder %s109, %s123
      %p125 = scmp.eq.s32.totalorder %s31, 0
      %p126 = por %p124, %p125
      %s128 = sadd.s32 %s127, 1
      %p131 = scmp.eq.s32.totalorder %s25, 1
      %p132 = scmp.ne.s32.totalorder %s127, %s129
      %p133 = scmp.eq.s32.totalorder %s25, 0
      %p134 = por %p132, %p133
      %p135 = scmp.ne.s32.totalorder %s127, %s129
      %p136 = scmp.eq.s32.totalorder %s30, 1
      %p137 = por %p135, %p136
      %p138 = scmp.ne.s32.totalorder %s129, %s130
      %p139 = scmp.eq.s32.totalorder %s30, 0
      %p140 = por %p138, %p139
      %p141 = scmp.ne.s32.totalorder %s129, %s130
      %p142 = scmp.eq.s32.totalorder %s31, 1
      %p143 = por %p141, %p142
      %p145 = scmp.ne.s32.totalorder %s130, %s144
      %p146 = scmp.eq.s32.totalorder %s31, 0
      %p147 = por %p145, %p146
      %s149 = sadd.s32 %s148, 1
      %p152 = scmp.eq.s32.totalorder %s25, 1
      %p153 = scmp.ne.s32.totalorder %s148, %s150
      %p154 = scmp.eq.s32.totalorder %s25, 0
      %p155 = por %p153, %p154
      %p156 = scmp.ne.s32.totalorder %s148, %s150
      %p157 = scmp.eq.s32.totalorder %s30, 1
      %p158 = por %p156, %p157
      %p159 = scmp.ne.s32.totalorder %s150, %s151
      %p160 = scmp.eq.s32.totalorder %s30, 0
      %p161 = por %p159, %p160
      %p162 = scmp.ne.s32.totalorder %s150, %s151
      %p163 = scmp.eq.s32.totalorder %s31, 1
      %p164 = por %p162, %p163
      %p166 = scmp.ne.s32.totalorder %s151, %s165
      %p167 = scmp.eq.s32.totalorder %s31, 0
      %p168 = por %p166, %p167
      %s170 = sadd.s32 %s169, 1
      %p173 = scmp.eq.s32.totalorder %s25, 1
      %p174 = scmp.ne.s32.totalorder %s169, %s171
      %p175 = scmp.eq.s32.totalorder %s25, 0
      %p176 = por %p174, %p175
      %p177 = scmp.ne.s32.totalorder %s169, %s171
      %p178 = scmp.eq.s32.totalorder %s30, 1
      %p179 = por %p177, %p178
      %p180 = scmp.ne.s32.totalorder %s171, %s172
      %p181 = scmp.eq.s32.totalorder %s30, 0
      %p182 = por %p180, %p181
      %p183 = scmp.ne.s32.totalorder %s171, %s172
      %p184 = scmp.eq.s32.totalorder %s31, 1
      %p185 = por %p183, %p184
      %p187 = scmp.ne.s32.totalorder %s172, %s186
      %p188 = scmp.eq.s32.totalorder %s31, 0
      %p189 = por %p187, %p188
      %s191 = sadd.s32 %s190, 1
      %p194 = scmp.eq.s32.totalorder %s25, 1
      %p195 = scmp.ne.s32.totalorder %s190, %s192
      %p196 = scmp.eq.s32.totalorder %s25, 0
      %p197 = por %p195, %p196
      %p198 = scmp.ne.s32.totalorder %s190, %s192
      %p199 = scmp.eq.s32.totalorder %s30, 1
      %p200 = por %p198, %p199
      %p201 = scmp.ne.s32.totalorder %s192, %s193
      %p202 = scmp.eq.s32.totalorder %s30, 0
      %p203 = por %p201, %p202
      %p204 = scmp.ne.s32.totalorder %s192, %s193
      %p205 = scmp.eq.s32.totalorder %s31, 1
      %p206 = por %p204, %p205
      %p208 = scmp.ne.s32.totalorder %s193, %s207
      %p209 = scmp.eq.s32.totalorder %s31, 0
      %p210 = por %p208, %p209
      %s212 = sadd.s32 %s211, 1
      %p215 = scmp.eq.s32.totalorder %s25, 1
      %p216 = scmp.ne.s32.totalorder %s211, %s213
      %p217 = scmp.eq.s32.totalorder %s25, 0
      %p218 = por %p216, %p217
      %p219 = scmp.ne.s32.totalorder %s211, %s213
      %p220 = scmp.eq.s32.totalorder %s30, 1
      %p221 = por %p219, %p220
      %p222 = scmp.ne.s32.totalorder %s213, %s214
      %p223 = scmp.eq.s32.totalorder %s30, 0
      %p224 = por %p222, %p223
      %p225 = scmp.ne.s32.totalorder %s213, %s214
      %p226 = scmp.eq.s32.totalorder %s31, 1
      %p227 = por %p225, %p226
      %p229 = scmp.ne.s32.totalorder %s214, %s228
      %p230 = scmp.eq.s32.totalorder %s31, 0
      %p231 = por %p229, %p230
      %s233 = sadd.s32 %s232, 1
      %p236 = scmp.eq.s32.totalorder %s25, 1
      %p237 = scmp.ne.s32.totalorder %s232, %s234
      %p238 = scmp.eq.s32.totalorder %s25, 0
      %p239 = por %p237, %p238
      %p240 = scmp.ne.s32.totalorder %s232, %s234
      %p241 = scmp.eq.s32.totalorder %s30, 1
      %p242 = por %p240, %p241
      %p243 = scmp.ne.s32.totalorder %s234, %s235
      %p244 = scmp.eq.s32.totalorder %s30, 0
      %p245 = por %p243, %p244
      %p246 = scmp.ne.s32.totalorder %s234, %s235
      %p247 = scmp.eq.s32.totalorder %s31, 1
      %p248 = por %p246, %p247
      %p250 = scmp.ne.s32.totalorder %s235, %s249
      %p251 = scmp.eq.s32.totalorder %s31, 0
      %p252 = por %p250, %p251
      %s254 = sadd.s32 %s253, 1
      %p257 = scmp.eq.s32.totalorder %s25, 1
      %p258 = scmp.ne.s32.totalorder %s253, %s255
      %p259 = scmp.eq.s32.totalorder %s25, 0
      %p260 = por %p258, %p259
      %p261 = scmp.ne.s32.totalorder %s253, %s255
      %p262 = scmp.eq.s32.totalorder %s30, 1
      %p263 = por %p261, %p262
      %p264 = scmp.ne.s32.totalorder %s255, %s256
      %p265 = scmp.eq.s32.totalorder %s30, 0
      %p266 = por %p264, %p265
      %p267 = scmp.ne.s32.totalorder %s255, %s256
      %p268 = scmp.eq.s32.totalorder %s31, 1
      %p269 = por %p267, %p268
      %p271 = scmp.ne.s32.totalorder %s256, %s270
      %p272 = scmp.eq.s32.totalorder %s31, 0
      %p273 = por %p271, %p272
      %s275 = sadd.s32 %s274, 1
      %p278 = scmp.eq.s32.totalorder %s25, 1
      %p279 = scmp.ne.s32.totalorder %s274, %s276
      %p280 = scmp.eq.s32.totalorder %s25, 0
      %p281 = por %p279, %p280
      %p282 = scmp.ne.s32.totalorder %s274, %s276
      %p283 = scmp.eq.s32.totalorder %s30, 1
      %p284 = por %p282, %p283
      %p285 = scmp.ne.s32.totalorder %s276, %s277
      %p286 = scmp.eq.s32.totalorder %s30, 0
      %p287 = por %p285, %p286
      %p288 = scmp.ne.s32.totalorder %s276, %s277
      %p289 = scmp.eq.s32.totalorder %s31, 1
      %p290 = por %p288, %p289
      %p292 = scmp.ne.s32.totalorder %s277, %s291
      %p293 = scmp.eq.s32.totalorder %s31, 0
      %p294 = por %p292, %p293
      %s296 = sadd.s32 %s295, 1
      %p299 = scmp.eq.s32.totalorder %s25, 1
      %p300 = scmp.ne.s32.totalorder %s295, %s297
      %p301 = scmp.eq.s32.totalorder %s25, 0
      %p302 = por %p300, %p301
      %p303 = scmp.ne.s32.totalorder %s295, %s297
      %p304 = scmp.eq.s32.totalorder %s30, 1
      %p305 = por %p303, %p304
      %p306 = scmp.ne.s32.totalorder %s297, %s298
      %p307 = scmp.eq.s32.totalorder %s30, 0
      %p308 = por %p306, %p307
      %p309 = scmp.ne.s32.totalorder %s297, %s298
      %p310 = scmp.eq.s32.totalorder %s31, 1
      %p311 = por %p309, %p310
      %p313 = scmp.ne.s32.totalorder %s298, %s312
      %p314 = scmp.eq.s32.totalorder %s31, 0
      %p315 = por %p313, %p314
      %s317 = sadd.s32 %s316, 1
      %p320 = scmp.eq.s32.totalorder %s25, 1
      %p321 = scmp.ne.s32.totalorder %s316, %s318
      %p322 = scmp.eq.s32.totalorder %s25, 0
      %p323 = por %p321, %p322
      %p324 = scmp.ne.s32.totalorder %s316, %s318
      %p325 = scmp.eq.s32.totalorder %s30, 1
      %p326 = por %p324, %p325
      %p327 = scmp.ne.s32.totalorder %s318, %s319
      %p328 = scmp.eq.s32.totalorder %s30, 0
      %p329 = por %p327, %p328
      %p330 = scmp.ne.s32.totalorder %s318, %s319
      %p331 = scmp.eq.s32.totalorder %s31, 1
      %p332 = por %p330, %p331
      %p334 = scmp.ne.s32.totalorder %s319, %s333
      %p335 = scmp.eq.s32.totalorder %s31, 0
      %p336 = por %p334, %p335
      %s338 = sadd.s32 %s337, 1
      %p341 = scmp.eq.s32.totalorder %s25, 1
      %p342 = scmp.ne.s32.totalorder %s337, %s339
      %p343 = scmp.eq.s32.totalorder %s25, 0
      %p344 = por %p342, %p343
      %p345 = scmp.ne.s32.totalorder %s337, %s339
      %p346 = scmp.eq.s32.totalorder %s30, 1
      %p347 = por %p345, %p346
      %p348 = scmp.ne.s32.totalorder %s339, %s340
      %p349 = scmp.eq.s32.totalorder %s30, 0
      %p350 = por %p348, %p349
      %p351 = scmp.ne.s32.totalorder %s339, %s340
      %p352 = scmp.eq.s32.totalorder %s31, 1
      %p353 = por %p351, %p352
      %p355 = scmp.ne.s32.totalorder %s340, %s354
      %p356 = scmp.eq.s32.totalorder %s31, 0
      %p357 = por %p355, %p356
      %s359 = sadd.s32 %s358, 1
      %p362 = scmp.eq.s32.totalorder %s25, 1
      %p363 = scmp.ne.s32.totalorder %s358, %s360
      %p364 = scmp.eq.s32.totalorder %s25, 0
      %p365 = por %p363, %p364
      %p366 = scmp.ne.s32.totalorder %s358, %s360
      %p367 = scmp.eq.s32.totalorder %s30, 1
      %p368 = por %p366, %p367
      %p369 = scmp.ne.s32.totalorder %s360, %s361
      %p370 = scmp.eq.s32.totalorder %s30, 0
      %p371 = por %p369, %p370
      %p372 = scmp.ne.s32.totalorder %s360, %s361
      %p373 = scmp.eq.s32.totalorder %s31, 1
      %p374 = por %p372, %p373
      %p376 = scmp.ne.s32.totalorder %s361, %s375
      %p377 = scmp.eq.s32.totalorder %s31, 0
      %p378 = por %p376, %p377
      %s379 = ssub.s32 %s25, %s32
      %p380 = scmp.eq.s32.totalorder %s379, 0
      %s382 = sadd.s32 %s381, 1
      %s383 = scalar_select %p380, %s381, %s382
      %p386 = pneg %p380
      %p387 = scmp.eq.s32.totalorder %s25, 1
      %p388 = por %p386, %p387
      %p389 = scmp.ne.s32.totalorder %s381, %s384
      %p390 = scmp.eq.s32.totalorder %s25, 0
      %p391 = por %p389, %p390
      %p392 = scmp.ne.s32.totalorder %s381, %s384
      %p393 = scmp.eq.s32.totalorder %s30, 1
      %p394 = por %p392, %p393
      %p395 = scmp.ne.s32.totalorder %s384, %s385
      %p396 = scmp.eq.s32.totalorder %s30, 0
      %p397 = por %p395, %p396
      %p398 = scmp.ne.s32.totalorder %s384, %s385
      %p399 = scmp.eq.s32.totalorder %s31, 1
      %p400 = por %p398, %p399
      %p402 = scmp.ne.s32.totalorder %s385, %s401
      %p403 = scmp.eq.s32.totalorder %s31, 0
      %p404 = por %p402, %p403
      %p405 = scmp.le.s32.totalorder 1, %s25
      %p406 = scmp.lt.s32.totalorder %s25, 3
      %p407 = pnand %p405, %p406
      %p408 = pneg %p407
      // Predicated region
      $region9: #{bert_forward.1} parent=5 // pred_check
        _
      $region10: #{bert_forward.1} parent=5 // pred_check_branch
        %410 = sbr.rel (%p407) target = $region12
      $region11: #{bert_forward.1} parent=5 // pred_region
        %s411 = ssub.s32 %s25, 1
        // Predicated region
        $region13: #{bert_forward.1} parent=11 // pred_check
          %p412 = pneg %p98
        $region14: #{bert_forward.1} parent=11 // pred_check_branch
          %414 = sbr.rel (%p412) target = $region16
        $region15: #{bert_forward.1} parent=11 // pred_region
          _
        $region16: #{bert_forward.1} parent=11 // pred_fallthru
          _
        // Predicated region
        $region17: #{bert_forward.1} parent=11 // pred_check
          %p415 = pneg %p119
        $region18: #{bert_forward.1} parent=11 // pred_check_branch
          %417 = sbr.rel (%p415) target = $region20
        $region19: #{bert_forward.1} parent=11 // pred_region
          _
        $region20: #{bert_forward.1} parent=11 // pred_fallthru
          _
        // Predicated region
        $region21: #{bert_forward.1} parent=11 // pred_check
          %p418 = pneg %p140
        $region22: #{bert_forward.1} parent=11 // pred_check_branch
          %420 = sbr.rel (%p418) target = $region24
        $region23: #{bert_forward.1} parent=11 // pred_region
          _
        $region24: #{bert_forward.1} parent=11 // pred_fallthru
          _
        // Predicated region
        $region25: #{bert_forward.1} parent=11 // pred_check
          %p421 = pneg %p161
        $region26: #{bert_forward.1} parent=11 // pred_check_branch
          %423 = sbr.rel (%p421) target = $region28
        $region27: #{bert_forward.1} parent=11 // pred_region
          _
        $region28: #{bert_forward.1} parent=11 // pred_fallthru
          _
        // Predicated region
        $region29: #{bert_forward.1} parent=11 // pred_check
          %p424 = pneg %p182
        $region30: #{bert_forward.1} parent=11 // pred_check_branch
          %426 = sbr.rel (%p424) target = $region32
        $region31: #{bert_forward.1} parent=11 // pred_region
          _
        $region32: #{bert_forward.1} parent=11 // pred_fallthru
          _
        // Predicated region
        $region33: #{bert_forward.1} parent=11 // pred_check
          %p427 = pneg %p203
        $region34: #{bert_forward.1} parent=11 // pred_check_branch
          %429 = sbr.rel (%p427) target = $region36
        $region35: #{bert_forward.1} parent=11 // pred_region
          _
        $region36: #{bert_forward.1} parent=11 // pred_fallthru
          _
        // Predicated region
        $region37: #{bert_forward.1} parent=11 // pred_check
          %p430 = pneg %p224
        $region38: #{bert_forward.1} parent=11 // pred_check_branch
          %432 = sbr.rel (%p430) target = $region40
        $region39: #{bert_forward.1} parent=11 // pred_region
          _
        $region40: #{bert_forward.1} parent=11 // pred_fallthru
          _
        // Predicated region
        $region41: #{bert_forward.1} parent=11 // pred_check
          %p433 = pneg %p245
        $region42: #{bert_forward.1} parent=11 // pred_check_branch
          %435 = sbr.rel (%p433) target = $region44
        $region43: #{bert_forward.1} parent=11 // pred_region
          _
        $region44: #{bert_forward.1} parent=11 // pred_fallthru
          _
        // Predicated region
        $region45: #{bert_forward.1} parent=11 // pred_check
          %p436 = pneg %p266
        $region46: #{bert_forward.1} parent=11 // pred_check_branch
          %438 = sbr.rel (%p436) target = $region48
        $region47: #{bert_forward.1} parent=11 // pred_region
          _
        $region48: #{bert_forward.1} parent=11 // pred_fallthru
          _
        // Predicated region
        $region49: #{bert_forward.1} parent=11 // pred_check
          %p439 = pneg %p287
        $region50: #{bert_forward.1} parent=11 // pred_check_branch
          %441 = sbr.rel (%p439) target = $region52
        $region51: #{bert_forward.1} parent=11 // pred_region
          _
        $region52: #{bert_forward.1} parent=11 // pred_fallthru
          _
        // Predicated region
        $region53: #{bert_forward.1} parent=11 // pred_check
          %p442 = pneg %p308
        $region54: #{bert_forward.1} parent=11 // pred_check_branch
          %444 = sbr.rel (%p442) target = $region56
        $region55: #{bert_forward.1} parent=11 // pred_region
          _
        $region56: #{bert_forward.1} parent=11 // pred_fallthru
          _
        // Predicated region
        $region57: #{bert_forward.1} parent=11 // pred_check
          %p445 = pneg %p329
        $region58: #{bert_forward.1} parent=11 // pred_check_branch
          %447 = sbr.rel (%p445) target = $region60
        $region59: #{bert_forward.1} parent=11 // pred_region
          _
        $region60: #{bert_forward.1} parent=11 // pred_fallthru
          _
        // Predicated region
        $region61: #{bert_forward.1} parent=11 // pred_check
          %p448 = pneg %p350
        $region62: #{bert_forward.1} parent=11 // pred_check_branch
          %450 = sbr.rel (%p448) target = $region64
        $region63: #{bert_forward.1} parent=11 // pred_region
          _
        $region64: #{bert_forward.1} parent=11 // pred_fallthru
          _
        // Predicated region
        $region65: #{bert_forward.1} parent=11 // pred_check
          %p451 = pneg %p371
        $region66: #{bert_forward.1} parent=11 // pred_check_branch
          %453 = sbr.rel (%p451) target = $region68
        $region67: #{bert_forward.1} parent=11 // pred_region
          _
        $region68: #{bert_forward.1} parent=11 // pred_fallthru
          _
      $region12: #{bert_forward.1} parent=5 // pred_fallthru
        _
      %p454 = scmp.lt.s32.totalorder %s25, 2
      // Predicated region
      $region69: #{bert_forward.1} parent=5 // pred_check
        %p455 = pneg %p454
      $region70: #{bert_forward.1} parent=5 // pred_check_branch
        %457 = sbr.rel (%p455) target = $region72
      $region71: #{bert_forward.1} parent=5 // pred_region
        // Predicated region
        $region73: #{bert_forward.1} parent=71 // pred_check
          %p458 = pneg %p45
        $region74: #{bert_forward.1} parent=71 // pred_check_branch
          %460 = sbr.rel (%p458) target = $region76
        $region75: #{bert_forward.1} parent=71 // pred_region
          %p461 = scmp.lt.s32.totalorder %s25, 1
          %s462 = scalar_select %p461, %s25, 1
          %s463 = smul.addr %s462, 8
          %s464 = scalar_lea.vmem %s0, %s463
        $region76: #{bert_forward.1} parent=71 // pred_fallthru
          _
        // Predicated region
        $region77: #{bert_forward.1} parent=71 // pred_check
          %p465 = pneg %p71
        $region78: #{bert_forward.1} parent=71 // pred_check_branch
          %467 = sbr.rel (%p465) target = $region80
        $region79: #{bert_forward.1} parent=71 // pred_region
          %p468 = scmp.lt.s32.totalorder %s25, 1
          %s469 = scalar_select %p468, %s25, 1
          %s470 = scalar_lea.vmem %s1, %s469
        $region80: #{bert_forward.1} parent=71 // pred_fallthru
          _
      $region72: #{bert_forward.1} parent=5 // pred_fallthru
        _
      %p471 = scmp.le.s32.totalorder 1, %s25
      %p472 = scmp.lt.s32.totalorder %s25, 3
      %p473 = pnand %p471, %p472
      %p474 = pneg %p473
      // Predicated region
      $region81: #{bert_forward.1} parent=5 // pred_check
        _
      $region82: #{bert_forward.1} parent=5 // pred_check_branch
        %476 = sbr.rel (%p473) target = $region84
      $region83: #{bert_forward.1} parent=5 // pred_region
        %s477 = ssub.s32 %s25, 1
        %p478 = scmp.lt.s32.totalorder %s30, 1
        %s479 = scalar_select %p478, %s30, 1
        %s480 = smul.addr %s479, 8
        %s481 = scalar_lea.vmem %s0, %s480
        %p482 = pneg %p51
        %p483 = pneg %p48
        %p484 = scmp.lt.s32.totalorder %s30, 1
        %s485 = scalar_select %p484, %s30, 1
        %s486 = scalar_lea.vmem %s1, %s485
        %p487 = pneg %p77
        %p488 = pneg %p74
        %p489 = pneg %p98
        %p490 = pneg %p95
        %p491 = pneg %p119
        %p492 = pneg %p116
        %p493 = pneg %p140
        %p494 = pneg %p137
        %p495 = pneg %p161
        %p496 = pneg %p158
        %p497 = pneg %p182
        %p498 = pneg %p179
        %p499 = pneg %p203
        %p500 = pneg %p200
        %p501 = pneg %p224
        %p502 = pneg %p221
        %p503 = pneg %p245
        %p504 = pneg %p242
        %p505 = pneg %p266
        %p506 = pneg %p263
        %p507 = pneg %p287
        %p508 = pneg %p284
        %p509 = pneg %p308
        %p510 = pneg %p305
        %p511 = pneg %p329
        %p512 = pneg %p326
        %p513 = pneg %p350
        %p514 = pneg %p347
        %p515 = pneg %p371
        %p516 = pneg %p368
        %p517 = pneg %p397
        %p518 = pneg %p394
        %s519 = sand.u32 %s384, 1
        %s520 = scalar_lea.sflag [#allocation3], %s519
        %s521 = sand.u32 %s384, 1
        %s522 = scalar_lea.vmem [#allocation2], %s521
        %p523 = scmp.lt.s32.totalorder %s30, 1
        %s524 = scalar_select %p523, %s30, 1
        %s525 = smul.addr %s524, 8
        %s526 = scalar_lea.vmem %s0, %s525
        %p527 = scmp.lt.s32.totalorder %s30, 1
        %s528 = scalar_select %p527, %s30, 1
        %s529 = scalar_lea.vmem %s1, %s528
        %v531 = vld [vmem:[%s529] sm:$0x1]
        %v532 = vld [vmem:[%s526] sm:$0xff]
        %v533 = vld [vmem:[%s2] sm:$0x1]
        %v534 = vld [vmem:[%s3] sm:$0x1]
        %vm535 = vcmask 261120
        %v536 = vsel %vm535, %v532, 0.0
        %537 = vadd.xlane.f32.xlu0 %v536
        %v538 = vpop.xlane.xlu0 %537
        %v539 = vrcp.pop 32.0
        %v540 = vmul.f32 %v538, %v539
        %v541 = vsub.f32 %v532, %v540
        %v542 = vmul.f32 %v541, %v541
        %v543 = vsel %vm535, %v542, 0.0
        %544 = vadd.xlane.f32.xlu0 %v543
        %v545 = vpop.xlane.xlu0 %544
        %v546 = vmul.f32 %v545, %v539
        %v547 = vadd.f32 %v546, 1e-12
        %v548 = vrsqrt.pop %v547
        %v549 = vmul.f32 %v541, %v548
        %v551 = vlaneseq
        %v552 = vshrl.u32 %v551, 7
        %v553 = vsub.s32 0, %v552
        %v554 = vrot.slane %v533, %v553
        %v556 = vmul.f32 %v549, %v554
        %v558 = vlaneseq
        %v559 = vshrl.u32 %v558, 7
        %v560 = vsub.s32 0, %v559
        %v561 = vrot.slane %v534, %v560
        %v563 = vadd.f32 %v556, %v561
        %v564 = vld [vmem:[%s4] sm:$0xff]
        %v565 = vld [vmem:[%s4 + $0x8] sm:$0xff]
        %v566 = vld [vmem:[%s4 + $0x10] sm:$0xff]
        %v567 = vld [vmem:[%s4 + $0x18] sm:$0xff]
        %v568 = vld [vmem:[%s5] sm:$0x1]
        %v569 = vpack.c.bf16 %v563, %v563
        %v570 = vpack.c.bf16 %v565, %v564
        %v571 = vpack.c.bf16 %v567, %v566
        %v573 = vlaneseq
        %v574 = vshrl.u32 %v573, 7
        %v575 = vsub.s32 0, %v574
        %v576 = vrot.slane %v568, %v575
        %v579 = vsel %vm535, %v569, 0
        %581 = vmatprep.subr.bf16.mxu0 0
        %582 = vmatpush1.bf16.msra.mxu0 0
        %583 = vmatprep.subr.bf16.mxu0 0
        %584 = vmatpush1.bf16.msra.mxu0 0
        %585 = vmatprep.subr.bf16.mxu0 0
        %586 = vmatpush1.bf16.msra.mxu0 0
        %587 = vmatprep.subr.bf16.mxu0 0
        %588 = vmatpush1.bf16.msra.mxu0 0
        %589 = vmatprep.subr.bf16.mxu0 0
        %590 = vmatpush1.bf16.msra.mxu0 0
        %591 = vmatprep.subr.bf16.mxu0 0
        %592 = vmatpush1.bf16.msra.mxu0 0
        %593 = vmatprep.subr.bf16.mxu0 0
        %594 = vmatpush1.bf16.msra.mxu0 %v571
        %595 = vmatprep.subr.bf16.mxu0 0
        %596 = vmatpush1.bf16.msra.mxu0 %v570
        %597 = vmatprep.subr.bf16.mxu0 0
        %598 = vmatpush2.bf16.msra.mxu0 0
        %599 = vmatprep.subr.bf16.mxu0 0
        %600 = vmatpush2.bf16.msra.mxu0 0
        %601 = vmatprep.subr.bf16.mxu0 0
        %602 = vmatpush2.bf16.msra.mxu0 0
        %603 = vmatprep.subr.bf16.mxu0 0
        %604 = vmatpush2.bf16.msra.mxu0 0
        %605 = vmatprep.subr.bf16.mxu0 0
        %606 = vmatpush2.bf16.msra.mxu0 0
        %607 = vmatprep.subr.bf16.mxu0 0
        %608 = vmatpush2.bf16.msra.mxu0 0
        %609 = vmatprep.subr.bf16.mxu0 0
        %610 = vmatpush2.bf16.msra.mxu0 0
        %611 = vmatprep.subr.bf16.mxu0 0
        %612 = vmatpush2.bf16.msra.mxu0 0
        %613 = vmatprep.mubr.bf16.mxu0 0
        %614 = vmatmul.mubr.bf16.gmra.mxu0 %v579
        %v615 = vpop.f32.mrf.mxu0
        %v616 = vadd.f32 %v576, %v615
        %v617 = vpop.f32.mrf.mxu0
        %v618 = vpop.f32.mrf.mxu0
        %v619 = vpop.f32.mrf.mxu0
        %620 = vdwg.mxu0
        %v621 = vpack.c.bf16 %v616, %v616
        %623 = vrot.lane.b32.xlu0 %v616, 96
        %v624 = vpop.permute.xlu0 %623
        %626 = vxpose.xlu0.b32.start [1/16] %v624, 128
        %627 = vxpose.xlu0.b32.cont [2/16] 0.0, 128
        %628 = vxpose.xlu0.b32.cont [3/16] 0.0, 128
        %629 = vxpose.xlu0.b32.cont [4/16] 0.0, 128
        %630 = vxpose.xlu0.b32.cont [5/16] 0.0, 128
        %631 = vxpose.xlu0.b32.cont [6/16] 0.0, 128
        %632 = vxpose.xlu0.b32.cont [7/16] 0.0, 128
        %633 = vxpose.xlu0.b32.cont [8/16] 0.0, 128
        %634 = vxpose.xlu0.b32.cont [9/16] 0.0, 128
        %635 = vxpose.xlu0.b32.cont [10/16] 0.0, 128
        %636 = vxpose.xlu0.b32.cont [11/16] 0.0, 128
        %637 = vxpose.xlu0.b32.cont [12/16] 0.0, 128
        %638 = vxpose.xlu0.b32.cont [13/16] 0.0, 128
        %639 = vxpose.xlu0.b32.cont [14/16] 0.0, 128
        %640 = vxpose.xlu0.b32.cont [15/16] 0.0, 128
        %641 = vxpose.xlu0.b32.end [16/16] 0.0, 128
        %v642 = vpop.trf.xlu0
        %v643 = vpop.trf.xlu0
        %v644 = vpop.trf.xlu0
        %v645 = vpop.trf.xlu0
        %v646 = vpop.trf.xlu0
        %v647 = vpop.trf.xlu0
        %v648 = vpop.trf.xlu0
        %v649 = vpop.trf.xlu0
        %v650 = vpop.trf.xlu0
        %v651 = vpop.trf.xlu0
        %v652 = vpop.trf.xlu0
        %v653 = vpop.trf.xlu0
        %v654 = vpop.trf.xlu0
        %v655 = vpop.trf.xlu0
        %v656 = vpop.trf.xlu0
        %v657 = vpop.trf.xlu0
        %v658 = vpack.c.bf16 %v643, %v642
        %vm659 = vcmask 130048
        %v661 = vsel %vm659, %v621, 0
        %663 = vmatprep.subr.bf16.mxu0 0
        %664 = vmatpush1.bf16.msra.mxu0 0
        %665 = vmatprep.subr.bf16.mxu0 0
        %666 = vmatpush1.bf16.msra.mxu0 0
        %667 = vmatprep.subr.bf16.mxu0 0
        %668 = vmatpush1.bf16.msra.mxu0 0
        %669 = vmatprep.subr.bf16.mxu0 0
        %670 = vmatpush1.bf16.msra.mxu0 0
        %671 = vmatprep.subr.bf16.mxu0 0
        %672 = vmatpush1.bf16.msra.mxu0 0
        %673 = vmatprep.subr.bf16.mxu0 0
        %674 = vmatpush1.bf16.msra.mxu0 0
        %675 = vmatprep.subr.bf16.mxu0 0
        %676 = vmatpush1.bf16.msra.mxu0 0
        %677 = vmatprep.subr.bf16.mxu0 0
        %678 = vmatpush1.bf16.msra.mxu0 %v658
        %679 = vmatprep.subr.bf16.mxu0 0
        %680 = vmatpush2.bf16.msra.mxu0 0
        %681 = vmatprep.subr.bf16.mxu0 0
        %682 = vmatpush2.bf16.msra.mxu0 0
        %683 = vmatprep.subr.bf16.mxu0 0
        %684 = vmatpush2.bf16.msra.mxu0 0
        %685 = vmatprep.subr.bf16.mxu0 0
        %686 = vmatpush2.bf16.msra.mxu0 0
        %687 = vmatprep.subr.bf16.mxu0 0
        %688 = vmatpush2.bf16.msra.mxu0 0
        %689 = vmatprep.subr.bf16.mxu0 0
        %690 = vmatpush2.bf16.msra.mxu0 0
        %691 = vmatprep.subr.bf16.mxu0 0
        %692 = vmatpush2.bf16.msra.mxu0 0
        %693 = vmatprep.subr.bf16.mxu0 0
        %694 = vmatpush2.bf16.msra.mxu0 0
        %695 = vmatprep.mubr.bf16.mxu0 0
        %696 = vmatmul.mubr.bf16.gmra.mxu0 %v661
        %v697 = vpop.f32.mrf.mxu0
        %v698 = vadd.f32 0.0, %v697
        %v699 = vpop.f32.mrf.mxu0
        %v700 = vpop.f32.mrf.mxu0
        %v701 = vpop.f32.mrf.mxu0
        %702 = vdwg.mxu0
        %v703 = vmul.f32 %v698, 0.25
        %v705 = vlaneseq
        %v706 = vshrl.u32 %v705, 7
        %v707 = vsub.s32 0, %v706
        %v708 = vrot.slane %v531, %v707
        %v710 = vadd.f32 %v703, %v708
        %vm711 = vcmask 64512
        %v712 = vsel %vm711, %v710, -inf
        %713 = vmax.xlane.f32.xlu0 %v712
        %v714 = vpop.xlane.xlu0 %713
        %v715 = vsub.f32 %v710, %v714
        %v716 = vmul.f32 %v715, 1.442695
        %v717 = vpow.pop %v716
        %v718 = vsel %vm711, %v717, 0.0
        %719 = vadd.xlane.f32.xlu0 %v718
        %v720 = vpop.xlane.xlu0 %719
        %v721 = vrcp.pop %v720
        %v722 = vmul.f32 %v717, %v721
        %v723 = vpack.c.bf16 %v722, %v722
        %725 = vrot.lane.b32.xlu0 %v621, 64
        %v726 = vpop.permute.xlu0 %725
        %v728 = vsel %vm711, %v723, 0
        %vm730 = vcmask 1043456
        %v732 = vsel %vm730, %v726, 0
        %734 = vmatprep.subr.bf16.mxu0 0
        %735 = vmatpush1.bf16.msra.mxu0 0
        %736 = vmatprep.subr.bf16.mxu0 0
        %737 = vmatpush1.bf16.msra.mxu0 0
        %738 = vmatprep.subr.bf16.mxu0 0
        %739 = vmatpush1.bf16.msra.mxu0 0
        %740 = vmatprep.subr.bf16.mxu0 0
        %741 = vmatpush1.bf16.msra.mxu0 0
        %742 = vmatprep.subr.bf16.mxu0 0
        %743 = vmatpush1.bf16.msra.mxu0 0
        %744 = vmatprep.subr.bf16.mxu0 0
        %745 = vmatpush1.bf16.msra.mxu0 0
        %746 = vmatprep.subr.bf16.mxu0 0
        %747 = vmatpush1.bf16.msra.mxu0 0
        %748 = vmatprep.subr.bf16.mxu0 0
        %749 = vmatpush1.bf16.msra.mxu0 %v732
        %750 = vmatprep.subr.bf16.mxu0 0
        %751 = vmatpush2.bf16.msra.mxu0 0
        %752 = vmatprep.subr.bf16.mxu0 0
        %753 = vmatpush2.bf16.msra.mxu0 0
        %754 = vmatprep.subr.bf16.mxu0 0
        %755 = vmatpush2.bf16.msra.mxu0 0
        %756 = vmatprep.subr.bf16.mxu0 0
        %757 = vmatpush2.bf16.msra.mxu0 0
        %758 = vmatprep.subr.bf16.mxu0 0
        %759 = vmatpush2.bf16.msra.mxu0 0
        %760 = vmatprep.subr.bf16.mxu0 0
        %761 = vmatpush2.bf16.msra.mxu0 0
        %762 = vmatprep.subr.bf16.mxu0 0
        %763 = vmatpush2.bf16.msra.mxu0 0
        %764 = vmatprep.subr.bf16.mxu0 0
        %765 = vmatpush2.bf16.msra.mxu0 0
        %766 = vmatprep.mubr.bf16.mxu0 0
        %767 = vmatmul.mubr.bf16.gmra.mxu0 %v728
        %v768 = vpop.f32.mrf.mxu0
        %v769 = vadd.f32 0.0, %v768
        %v770 = vpop.f32.mrf.mxu0
        %v771 = vpop.f32.mrf.mxu0
        %v772 = vpop.f32.mrf.mxu0
        %773 = vdwg.mxu0
        %774 = vrot.lane.b32.xlu0 %v616, 80
        %v775 = vpop.permute.xlu0 %774
        %777 = vxpose.xlu0.b32.start [1/16] %v775, 128
        %778 = vxpose.xlu0.b32.cont [2/16] 0.0, 128
        %779 = vxpose.xlu0.b32.cont [3/16] 0.0, 128
        %780 = vxpose.xlu0.b32.cont [4/16] 0.0, 128
        %781 = vxpose.xlu0.b32.cont [5/16] 0.0, 128
        %782 = vxpose.xlu0.b32.cont [6/16] 0.0, 128
        %783 = vxpose.xlu0.b32.cont [7/16] 0.0, 128
        %784 = vxpose.xlu0.b32.cont [8/16] 0.0, 128
        %785 = vxpose.xlu0.b32.cont [9/16] 0.0, 128
        %786 = vxpose.xlu0.b32.cont [10/16] 0.0, 128
        %787 = vxpose.xlu0.b32.cont [11/16] 0.0, 128
        %788 = vxpose.xlu0.b32.cont [12/16] 0.0, 128
        %789 = vxpose.xlu0.b32.cont [13/16] 0.0, 128
        %790 = vxpose.xlu0.b32.cont [14/16] 0.0, 128
        %791 = vxpose.xlu0.b32.cont [15/16] 0.0, 128
        %792 = vxpose.xlu0.b32.end [16/16] 0.0, 128
        %v793 = vpop.trf.xlu0
        %v794 = vpop.trf.xlu0
        %v795 = vpop.trf.xlu0
        %v796 = vpop.trf.xlu0
        %v797 = vpop.trf.xlu0
        %v798 = vpop.trf.xlu0
        %v799 = vpop.trf.xlu0
        %v800 = vpop.trf.xlu0
        %v801 = vpop.trf.xlu0
        %v802 = vpop.trf.xlu0
        %v803 = vpop.trf.xlu0
        %v804 = vpop.trf.xlu0
        %v805 = vpop.trf.xlu0
        %v806 = vpop.trf.xlu0
        %v807 = vpop.trf.xlu0
        %v808 = vpop.trf.xlu0
        %v809 = vpack.c.bf16 %v794, %v793
        %810 = vrot.lane.b32.xlu0 %v621, 112
        %v811 = vpop.permute.xlu0 %810
        %v813 = vsel %vm659, %v811, 0
        %815 = vmatprep.subr.bf16.mxu0 0
        %816 = vmatpush1.bf16.msra.mxu0 0
        %817 = vmatprep.subr.bf16.mxu0 0
        %818 = vmatpush1.bf16.msra.mxu0 0
        %819 = vmatprep.subr.bf16.mxu0 0
        %820 = vmatpush1.bf16.msra.mxu0 0
        %821 = vmatprep.subr.bf16.mxu0 0
        %822 = vmatpush1.bf16.msra.mxu0 0
        %823 = vmatprep.subr.bf16.mxu0 0
        %824 = vmatpush1.bf16.msra.mxu0 0
        %825 = vmatprep.subr.bf16.mxu0 0
        %826 = vmatpush1.bf16.msra.mxu0 0
        %827 = vmatprep.subr.bf16.mxu0 0
        %828 = vmatpush1.bf16.msra.mxu0 0
        %829 = vmatprep.subr.bf16.mxu0 0
        %830 = vmatpush1.bf16.msra.mxu0 %v809
        %831 = vmatprep.subr.bf16.mxu0 0
        %832 = vmatpush2.bf16.msra.mxu0 0
        %833 = vmatprep.subr.bf16.mxu0 0
        %834 = vmatpush2.bf16.msra.mxu0 0
        %835 = vmatprep.subr.bf16.mxu0 0
        %836 = vmatpush2.bf16.msra.mxu0 0
        %837 = vmatprep.subr.bf16.mxu0 0
        %838 = vmatpush2.bf16.msra.mxu0 0
        %839 = vmatprep.subr.bf16.mxu0 0
        %840 = vmatpush2.bf16.msra.mxu0 0
        %841 = vmatprep.subr.bf16.mxu0 0
        %842 = vmatpush2.bf16.msra.mxu0 0
        %843 = vmatprep.subr.bf16.mxu0 0
        %844 = vmatpush2.bf16.msra.mxu0 0
        %845 = vmatprep.subr.bf16.mxu0 0
        %846 = vmatpush2.bf16.msra.mxu0 0
        %847 = vmatprep.mubr.bf16.mxu0 0
        %848 = vmatmul.mubr.bf16.gmra.mxu0 %v813
        %v849 = vpop.f32.mrf.mxu0
        %v850 = vadd.f32 0.0, %v849
        %v851 = vpop.f32.mrf.mxu0
        %v852 = vpop.f32.mrf.mxu0
        %v853 = vpop.f32.mrf.mxu0
        %854 = vdwg.mxu0
        %v855 = vmul.f32 %v850, 0.25
        %v856 = vadd.f32 %v855, %v708
        %v857 = vsel %vm711, %v856, -inf
        %858 = vmax.xlane.f32.xlu0 %v857
        %v859 = vpop.xlane.xlu0 %858
        %v860 = vsub.f32 %v856, %v859
        %v861 = vmul.f32 %v860, 1.442695
        %v862 = vpow.pop %v861
        %v863 = vsel %vm711, %v862, 0.0
        %864 = vadd.xlane.f32.xlu0 %v863
        %v865 = vpop.xlane.xlu0 %864
        %v866 = vrcp.pop %v865
        %v867 = vmul.f32 %v862, %v866
        %v868 = vpack.c.bf16 %v867, %v867
        %869 = vrot.lane.b32.xlu0 %v621, 48
        %v870 = vpop.permute.xlu0 %869
        %v872 = vsel %vm711, %v868, 0
        %v875 = vsel %vm730, %v870, 0
        %877 = vmatprep.subr.bf16.mxu0 0
        %878 = vmatpush1.bf16.msra.mxu0 0
        %879 = vmatprep.subr.bf16.mxu0 0
        %880 = vmatpush1.bf16.msra.mxu0 0
        %881 = vmatprep.subr.bf16.mxu0 0
        %882 = vmatpush1.bf16.msra.mxu0 0
        %883 = vmatprep.subr.bf16.mxu0 0
        %884 = vmatpush1.bf16.msra.mxu0 0
        %885 = vmatprep.subr.bf16.mxu0 0
        %886 = vmatpush1.bf16.msra.mxu0 0
        %887 = vmatprep.subr.bf16.mxu0 0
        %888 = vmatpush1.bf16.msra.mxu0 0
        %889 = vmatprep.subr.bf16.mxu0 0
        %890 = vmatpush1.bf16.msra.mxu0 0
        %891 = vmatprep.subr.bf16.mxu0 0
        %892 = vmatpush1.bf16.msra.mxu0 %v875
        %893 = vmatprep.subr.bf16.mxu0 0
        %894 = vmatpush2.bf16.msra.mxu0 0
        %895 = vmatprep.subr.bf16.mxu0 0
        %896 = vmatpush2.bf16.msra.mxu0 0
        %897 = vmatprep.subr.bf16.mxu0 0
        %898 = vmatpush2.bf16.msra.mxu0 0
        %899 = vmatprep.subr.bf16.mxu0 0
        %900 = vmatpush2.bf16.msra.mxu0 0
        %901 = vmatprep.subr.bf16.mxu0 0
        %902 = vmatpush2.bf16.msra.mxu0 0
        %903 = vmatprep.subr.bf16.mxu0 0
        %904 = vmatpush2.bf16.msra.mxu0 0
        %905 = vmatprep.subr.bf16.mxu0 0
        %906 = vmatpush2.bf16.msra.mxu0 0
        %907 = vmatprep.subr.bf16.mxu0 0
        %908 = vmatpush2.bf16.msra.mxu0 0
        %909 = vmatprep.mubr.bf16.mxu0 0
        %910 = vmatmul.mubr.bf16.gmra.mxu0 %v872
        %v911 = vpop.f32.mrf.mxu0
        %v912 = vadd.f32 0.0, %v911
        %v913 = vpop.f32.mrf.mxu0
        %v914 = vpop.f32.mrf.mxu0
        %v915 = vpop.f32.mrf.mxu0
        %916 = vdwg.mxu0
        %918 = vrot.lane.b32.xlu0 %v912, 16
        %v919 = vpop.permute.xlu0 %918
        %v921 = vsel %vm659, %v769, %v919
        %v922 = vld [vmem:[%s6] sm:$0xff]
        %v923 = vld [vmem:[%s6 + $0x8] sm:$0xff]
        %v924 = vld [vmem:[%s6 + $0x10] sm:$0xff]
        %v925 = vld [vmem:[%s6 + $0x18] sm:$0xff]
        %v926 = vld [vmem:[%s7] sm:$0x1]
        %v927 = vpack.c.bf16 %v921, %v921
        %v928 = vpack.c.bf16 %v923, %v922
        %v929 = vpack.c.bf16 %v925, %v924
        %v931 = vlaneseq
        %v932 = vshrl.u32 %v931, 7
        %v933 = vsub.s32 0, %v932
        %v934 = vrot.slane %v926, %v933
        %v937 = vsel %vm535, %v927, 0
        %939 = vmatprep.subr.bf16.mxu0 0
        %940 = vmatpush1.bf16.msra.mxu0 0
        %941 = vmatprep.subr.bf16.mxu0 0
        %942 = vmatpush1.bf16.msra.mxu0 0
        %943 = vmatprep.subr.bf16.mxu0 0
        %944 = vmatpush1.bf16.msra.mxu0 0
        %945 = vmatprep.subr.bf16.mxu0 0
        %946 = vmatpush1.bf16.msra.mxu0 0
        %947 = vmatprep.subr.bf16.mxu0 0
        %948 = vmatpush1.bf16.msra.mxu0 0
        %949 = vmatprep.subr.bf16.mxu0 0
        %950 = vmatpush1.bf16.msra.mxu0 0
        %951 = vmatprep.subr.bf16.mxu0 0
        %952 = vmatpush1.bf16.msra.mxu0 %v929
        %953 = vmatprep.subr.bf16.mxu0 0
        %954 = vmatpush1.bf16.msra.mxu0 %v928
        %955 = vmatprep.subr.bf16.mxu0 0
        %956 = vmatpush2.bf16.msra.mxu0 0
        %957 = vmatprep.subr.bf16.mxu0 0
        %958 = vmatpush2.bf16.msra.mxu0 0
        %959 = vmatprep.subr.bf16.mxu0 0
        %960 = vmatpush2.bf16.msra.mxu0 0
        %961 = vmatprep.subr.bf16.mxu0 0
        %962 = vmatpush2.bf16.msra.mxu0 0
        %963 = vmatprep.subr.bf16.mxu0 0
        %964 = vmatpush2.bf16.msra.mxu0 0
        %965 = vmatprep.subr.bf16.mxu0 0
        %966 = vmatpush2.bf16.msra.mxu0 0
        %967 = vmatprep.subr.bf16.mxu0 0
        %968 = vmatpush2.bf16.msra.mxu0 0
        %969 = vmatprep.subr.bf16.mxu0 0
        %970 = vmatpush2.bf16.msra.mxu0 0
        %971 = vmatprep.mubr.bf16.mxu0 0
        %972 = vmatmul.mubr.bf16.gmra.mxu0 %v937
        %v973 = vpop.f32.mrf.mxu0
        %v974 = vadd.f32 %v934, %v973
        %v975 = vpop.f32.mrf.mxu0
        %v976 = vpop.f32.mrf.mxu0
        %v977 = vpop.f32.mrf.mxu0
        %978 = vdwg.mxu0
        %v979 = vadd.f32 %v974, %v563
        %v980 = vld [vmem:[%s8] sm:$0x1]
        %v981 = vld [vmem:[%s9] sm:$0x1]
        %v982 = vsel %vm535, %v979, 0.0
        %983 = vadd.xlane.f32.xlu0 %v982
        %v984 = vpop.xlane.xlu0 %983
        %v985 = vmul.f32 %v984, %v539
        %v986 = vsub.f32 %v979, %v985
        %v987 = vmul.f32 %v986, %v986
        %v988 = vsel %vm535, %v987, 0.0
        %989 = vadd.xlane.f32.xlu0 %v988
        %v990 = vpop.xlane.xlu0 %989
        %v991 = vmul.f32 %v990, %v539
        %v992 = vadd.f32 %v991, 1e-12
        %v993 = vrsqrt.pop %v992
        %v994 = vmul.f32 %v986, %v993
        %v996 = vlaneseq
        %v997 = vshrl.u32 %v996, 7
        %v998 = vsub.s32 0, %v997
        %v999 = vrot.slane %v980, %v998
        %v1001 = vmul.f32 %v994, %v999
        %v1003 = vlaneseq
        %v1004 = vshrl.u32 %v1003, 7
        %v1005 = vsub.s32 0, %v1004
        %v1006 = vrot.slane %v981, %v1005
        %v1008 = vadd.f32 %v1001, %v1006
        %v1009 = vld [vmem:[%s10] sm:$0xff]
        %v1010 = vld [vmem:[%s10 + $0x8] sm:$0xff]
        %v1011 = vld [vmem:[%s10 + $0x10] sm:$0xff]
        %v1012 = vld [vmem:[%s10 + $0x18] sm:$0xff]
        %v1013 = vld [vmem:[%s11] sm:$0x1]
        %v1014 = vpack.c.bf16 %v1008, %v1008
        %v1015 = vpack.c.bf16 %v1010, %v1009
        %v1016 = vpack.c.bf16 %v1012, %v1011
        %v1018 = vlaneseq
        %v1019 = vshrl.u32 %v1018, 7
        %v1020 = vsub.s32 0, %v1019
        %v1021 = vrot.slane %v1013, %v1020
        %v1024 = vsel %vm535, %v1014, 0
        %1026 = vmatprep.subr.bf16.mxu0 0
        %1027 = vmatpush1.bf16.msra.mxu0 0
        %1028 = vmatprep.subr.bf16.mxu0 0
        %1029 = vmatpush1.bf16.msra.mxu0 0
        %1030 = vmatprep.subr.bf16.mxu0 0
        %1031 = vmatpush1.bf16.msra.mxu0 0
        %1032 = vmatprep.subr.bf16.mxu0 0
        %1033 = vmatpush1.bf16.msra.mxu0 0
        %1034 = vmatprep.subr.bf16.mxu0 0
        %1035 = vmatpush1.bf16.msra.mxu0 0
        %1036 = vmatprep.subr.bf16.mxu0 0
        %1037 = vmatpush1.bf16.msra.mxu0 0
        %1038 = vmatprep.subr.bf16.mxu0 0
        %1039 = vmatpush1.bf16.msra.mxu0 %v1016
        %1040 = vmatprep.subr.bf16.mxu0 0
        %1041 = vmatpush1.bf16.msra.mxu0 %v1015
        %1042 = vmatprep.subr.bf16.mxu0 0
        %1043 = vmatpush2.bf16.msra.mxu0 0
        %1044 = vmatprep.subr.bf16.mxu0 0
        %1045 = vmatpush2.bf16.msra.mxu0 0
        %1046 = vmatprep.subr.bf16.mxu0 0
        %1047 = vmatpush2.bf16.msra.mxu0 0
        %1048 = vmatprep.subr.bf16.mxu0 0
        %1049 = vmatpush2.bf16.msra.mxu0 0
        %1050 = vmatprep.subr.bf16.mxu0 0
        %1051 = vmatpush2.bf16.msra.mxu0 0
        %1052 = vmatprep.subr.bf16.mxu0 0
        %1053 = vmatpush2.bf16.msra.mxu0 0
        %1054 = vmatprep.subr.bf16.mxu0 0
        %1055 = vmatpush2.bf16.msra.mxu0 0
        %1056 = vmatprep.subr.bf16.mxu0 0
        %1057 = vmatpush2.bf16.msra.mxu0 0
        %1058 = vmatprep.mubr.bf16.mxu0 0
        %1059 = vmatmul.mubr.bf16.gmra.mxu0 %v1024
        %v1060 = vpop.f32.mrf.mxu0
        %v1061 = vadd.f32 %v1021, %v1060
        %v1062 = vpop.f32.mrf.mxu0
        %v1063 = vpop.f32.mrf.mxu0
        %v1064 = vpop.f32.mrf.mxu0
        %1065 = vdwg.mxu0
        %v1066 = vmul.f32 %v1061, 0.5
        %v1067 = vmul.f32 %v1061, 0.044715
        %v1068 = vmul.f32 %v1067, %v1061
        %v1069 = vmul.f32 %v1068, %v1061
        %v1070 = vadd.f32 %v1061, %v1069
        %v1071 = vmul.f32 %v1070, 0.7978846
        %v1072 = vtanh.pop %v1071
        %v1073 = vadd.f32 %v1072, 1.0
        %v1074 = vmul.f32 %v1066, %v1073
        %v1075 = vld [vmem:[%s12] sm:$0xff]
        %v1076 = vld [vmem:[%s12 + $0x8] sm:$0xff]
        %v1077 = vld [vmem:[%s12 + $0x10] sm:$0xff]
        %v1078 = vld [vmem:[%s12 + $0x18] sm:$0xff]
        %v1079 = vld [vmem:[%s12 + $0x20] sm:$0xff]
        %v1080 = vld [vmem:[%s12 + $0x28] sm:$0xff]
        %v1081 = vld [vmem:[%s12 + $0x30] sm:$0xff]
        %v1082 = vld [vmem:[%s12 + $0x38] sm:$0xff]
        %v1083 = vld [vmem:[%s13] sm:$0x1]
        %v1084 = vpack.c.bf16 %v1074, %v1074
        %v1085 = vpack.c.bf16 %v1076, %v1075
        %v1086 = vpack.c.bf16 %v1078, %v1077
        %v1087 = vpack.c.bf16 %v1080, %v1079
        %v1088 = vpack.c.bf16 %v1082, %v1081
        %v1090 = vlaneseq
        %v1091 = vshrl.u32 %v1090, 7
        %v1092 = vsub.s32 0, %v1091
        %v1093 = vrot.slane %v1083, %v1092
        %vm1095 = vcmask 523264
        %v1097 = vsel %vm1095, %v1084, 0
        %1099 = vmatprep.subr.bf16.mxu0 0
        %1100 = vmatpush1.bf16.msra.mxu0 0
        %1101 = vmatprep.subr.bf16.mxu0 0
        %1102 = vmatpush1.bf16.msra.mxu0 0
        %1103 = vmatprep.subr.bf16.mxu0 0
        %1104 = vmatpush1.bf16.msra.mxu0 0
        %1105 = vmatprep.subr.bf16.mxu0 0
        %1106 = vmatpush1.bf16.msra.mxu0 0
        %1107 = vmatprep.subr.bf16.mxu0 0
        %1108 = vmatpush1.bf16.msra.mxu0 %v1088
        %1109 = vmatprep.subr.bf16.mxu0 0
        %1110 = vmatpush1.bf16.msra.mxu0 %v1087
        %1111 = vmatprep.subr.bf16.mxu0 0
        %1112 = vmatpush1.bf16.msra.mxu0 %v1086
        %1113 = vmatprep.subr.bf16.mxu0 0
        %1114 = vmatpush1.bf16.msra.mxu0 %v1085
        %1115 = vmatprep.subr.bf16.mxu0 0
        %1116 = vmatpush2.bf16.msra.mxu0 0
        %1117 = vmatprep.subr.bf16.mxu0 0
        %1118 = vmatpush2.bf16.msra.mxu0 0
        %1119 = vmatprep.subr.bf16.mxu0 0
        %1120 = vmatpush2.bf16.msra.mxu0 0
        %1121 = vmatprep.subr.bf16.mxu0 0
        %1122 = vmatpush2.bf16.msra.mxu0 0
        %1123 = vmatprep.subr.bf16.mxu0 0
        %1124 = vmatpush2.bf16.msra.mxu0 0
        %1125 = vmatprep.subr.bf16.mxu0 0
        %1126 = vmatpush2.bf16.msra.mxu0 0
        %1127 = vmatprep.subr.bf16.mxu0 0
        %1128 = vmatpush2.bf16.msra.mxu0 0
        %1129 = vmatprep.subr.bf16.mxu0 0
        %1130 = vmatpush2.bf16.msra.mxu0 0
        %1131 = vmatprep.mubr.bf16.mxu0 0
        %1132 = vmatmul.mubr.bf16.gmra.mxu0 %v1097
        %v1133 = vpop.f32.mrf.mxu0
        %v1134 = vadd.f32 %v1093, %v1133
        %v1135 = vpop.f32.mrf.mxu0
        %v1136 = vpop.f32.mrf.mxu0
        %v1137 = vpop.f32.mrf.mxu0
        %1138 = vdwg.mxu0
        %v1139 = vadd.f32 %v1134, %v1008
        %v1140 = vld [vmem:[%s14] sm:$0x1]
        %v1141 = vld [vmem:[%s15] sm:$0x1]
        %v1142 = vsel %vm535, %v1139, 0.0
        %1143 = vadd.xlane.f32.xlu0 %v1142
        %v1144 = vpop.xlane.xlu0 %1143
        %v1145 = vmul.f32 %v1144, %v539
        %v1146 = vsub.f32 %v1139, %v1145
        %v1147 = vmul.f32 %v1146, %v1146
        %v1148 = vsel %vm535, %v1147, 0.0
        %1149 = vadd.xlane.f32.xlu0 %v1148
        %v1150 = vpop.xlane.xlu0 %1149
        %v1151 = vmul.f32 %v1150, %v539
        %v1152 = vadd.f32 %v1151, 1e-12
        %v1153 = vrsqrt.pop %v1152
        %v1154 = vmul.f32 %v1146, %v1153
        %v1156 = vlaneseq
        %v1157 = vshrl.u32 %v1156, 7
        %v1158 = vsub.s32 0, %v1157
        %v1159 = vrot.slane %v1140, %v1158
        %v1161 = vmul.f32 %v1154, %v1159
        %v1163 = vlaneseq
        %v1164 = vshrl.u32 %v1163, 7
        %v1165 = vsub.s32 0, %v1164
        %v1166 = vrot.slane %v1141, %v1165
        %v1168 = vadd.f32 %v1161, %v1166
        %s1169 = scalar_lea.vmem %s4, 32
        %v1170 = vld [vmem:[%s1169] sm:$0xff]
        %v1171 = vld [vmem:[%s1169 + $0x8] sm:$0xff]
        %v1172 = vld [vmem:[%s1169 + $0x10] sm:$0xff]
        %v1173 = vld [vmem:[%s1169 + $0x18] sm:$0xff]
        %s1174 = scalar_lea.vmem %s5, 1
        %v1175 = vld [vmem:[%s1174] sm:$0x1]
        %v1176 = vpack.c.bf16 %v1168, %v1168
        %v1177 = vpack.c.bf16 %v1171, %v1170
        %v1178 = vpack.c.bf16 %v1173, %v1172
        %v1180 = vlaneseq
        %v1181 = vshrl.u32 %v1180, 7
        %v1182 = vsub.s32 0, %v1181
        %v1183 = vrot.slane %v1175, %v1182
        %v1186 = vsel %vm535, %v1176, 0
        %1188 = vmatprep.subr.bf16.mxu0 0
        %1189 = vmatpush1.bf16.msra.mxu0 0
        %1190 = vmatprep.subr.bf16.mxu0 0
        %1191 = vmatpush1.bf16.msra.mxu0 0
        %1192 = vmatprep.subr.bf16.mxu0 0
        %1193 = vmatpush1.bf16.msra.mxu0 0
        %1194 = vmatprep.subr.bf16.mxu0 0
        %1195 = vmatpush1.bf16.msra.mxu0 0
        %1196 = vmatprep.subr.bf16.mxu0 0
        %1197 = vmatpush1.bf16.msra.mxu0 0
        %1198 = vmatprep.subr.bf16.mxu0 0
        %1199 = vmatpush1.bf16.msra.mxu0 0
        %1200 = vmatprep.subr.bf16.mxu0 0
        %1201 = vmatpush1.bf16.msra.mxu0 %v1178
        %1202 = vmatprep.subr.bf16.mxu0 0
        %1203 = vmatpush1.bf16.msra.mxu0 %v1177
        %1204 = vmatprep.subr.bf16.mxu0 0
        %1205 = vmatpush2.bf16.msra.mxu0 0
        %1206 = vmatprep.subr.bf16.mxu0 0
        %1207 = vmatpush2.bf16.msra.mxu0 0
        %1208 = vmatprep.subr.bf16.mxu0 0
        %1209 = vmatpush2.bf16.msra.mxu0 0
        %1210 = vmatprep.subr.bf16.mxu0 0
        %1211 = vmatpush2.bf16.msra.mxu0 0
        %1212 = vmatprep.subr.bf16.mxu0 0
        %1213 = vmatpush2.bf16.msra.mxu0 0
        %1214 = vmatprep.subr.bf16.mxu0 0
        %1215 = vmatpush2.bf16.msra.mxu0 0
        %1216 = vmatprep.subr.bf16.mxu0 0
        %1217 = vmatpush2.bf16.msra.mxu0 0
        %1218 = vmatprep.subr.bf16.mxu0 0
        %1219 = vmatpush2.bf16.msra.mxu0 0
        %1220 = vmatprep.mubr.bf16.mxu0 0
        %1221 = vmatmul.mubr.bf16.gmra.mxu0 %v1186
        %v1222 = vpop.f32.mrf.mxu0
        %v1223 = vadd.f32 %v1183, %v1222
        %v1224 = vpop.f32.mrf.mxu0
        %v1225 = vpop.f32.mrf.mxu0
        %v1226 = vpop.f32.mrf.mxu0
        %1227 = vdwg.mxu0
        %v1228 = vpack.c.bf16 %v1223, %v1223
        %1230 = vrot.lane.b32.xlu0 %v1223, 96
        %v1231 = vpop.permute.xlu0 %1230
        %1233 = vxpose.xlu0.b32.start [1/16] %v1231, 128
        %1234 = vxpose.xlu0.b32.cont [2/16] 0.0, 128
        %1235 = vxpose.xlu0.b32.cont [3/16] 0.0, 128
        %1236 = vxpose.xlu0.b32.cont [4/16] 0.0, 128
        %1237 = vxpose.xlu0.b32.cont [5/16] 0.0, 128
        %1238 = vxpose.xlu0.b32.cont [6/16] 0.0, 128
        %1239 = vxpose.xlu0.b32.cont [7/16] 0.0, 128
        %1240 = vxpose.xlu0.b32.cont [8/16] 0.0, 128
        %1241 = vxpose.xlu0.b32.cont [9/16] 0.0, 128
        %1242 = vxpose.xlu0.b32.cont [10/16] 0.0, 128
        %1243 = vxpose.xlu0.b32.cont [11/16] 0.0, 128
        %1244 = vxpose.xlu0.b32.cont [12/16] 0.0, 128
        %1245 = vxpose.xlu0.b32.cont [13/16] 0.0, 128
        %1246 = vxpose.xlu0.b32.cont [14/16] 0.0, 128
        %1247 = vxpose.xlu0.b32.cont [15/16] 0.0, 128
        %1248 = vxpose.xlu0.b32.end [16/16] 0.0, 128
        %v1249 = vpop.trf.xlu0
        %v1250 = vpop.trf.xlu0
        %v1251 = vpop.trf.xlu0
        %v1252 = vpop.trf.xlu0
        %v1253 = vpop.trf.xlu0
        %v1254 = vpop.trf.xlu0
        %v1255 = vpop.trf.xlu0
        %v1256 = vpop.trf.xlu0
        %v1257 = vpop.trf.xlu0
        %v1258 = vpop.trf.xlu0
        %v1259 = vpop.trf.xlu0
        %v1260 = vpop.trf.xlu0
        %v1261 = vpop.trf.xlu0
        %v1262 = vpop.trf.xlu0
        %v1263 = vpop.trf.xlu0
        %v1264 = vpop.trf.xlu0
        %v1265 = vpack.c.bf16 %v1250, %v1249
        %v1267 = vsel %vm659, %v1228, 0
        %1269 = vmatprep.subr.bf16.mxu0 0
        %1270 = vmatpush1.bf16.msra.mxu0 0
        %1271 = vmatprep.subr.bf16.mxu0 0
        %1272 = vmatpush1.bf16.msra.mxu0 0
        %1273 = vmatprep.subr.bf16.mxu0 0
        %1274 = vmatpush1.bf16.msra.mxu0 0
        %1275 = vmatprep.subr.bf16.mxu0 0
        %1276 = vmatpush1.bf16.msra.mxu0 0
        %1277 = vmatprep.subr.bf16.mxu0 0
        %1278 = vmatpush1.bf16.msra.mxu0 0
        %1279 = vmatprep.subr.bf16.mxu0 0
        %1280 = vmatpush1.bf16.msra.mxu0 0
        %1281 = vmatprep.subr.bf16.mxu0 0
        %1282 = vmatpush1.bf16.msra.mxu0 0
        %1283 = vmatprep.subr.bf16.mxu0 0
        %1284 = vmatpush1.bf16.msra.mxu0 %v1265
        %1285 = vmatprep.subr.bf16.mxu0 0
        %1286 = vmatpush2.bf16.msra.mxu0 0
        %1287 = vmatprep.subr.bf16.mxu0 0
        %1288 = vmatpush2.bf16.msra.mxu0 0
        %1289 = vmatprep.subr.bf16.mxu0 0
        %1290 = vmatpush2.bf16.msra.mxu0 0
        %1291 = vmatprep.subr.bf16.mxu0 0
        %1292 = vmatpush2.bf16.msra.mxu0 0
        %1293 = vmatprep.subr.bf16.mxu0 0
        %1294 = vmatpush2.bf16.msra.mxu0 0
        %1295 = vmatprep.subr.bf16.mxu0 0
        %1296 = vmatpush2.bf16.msra.mxu0 0
        %1297 = vmatprep.subr.bf16.mxu0 0
        %1298 = vmatpush2.bf16.msra.mxu0 0
        %1299 = vmatprep.subr.bf16.mxu0 0
        %1300 = vmatpush2.bf16.msra.mxu0 0
        %1301 = vmatprep.mubr.bf16.mxu0 0
        %1302 = vmatmul.mubr.bf16.gmra.mxu0 %v1267
        %v1303 = vpop.f32.mrf.mxu0
        %v1304 = vadd.f32 0.0, %v1303
        %v1305 = vpop.f32.mrf.mxu0
        %v1306 = vpop.f32.mrf.mxu0
        %v1307 = vpop.f32.mrf.mxu0
        %1308 = vdwg.mxu0
        %v1309 = vmul.f32 %v1304, 0.25
        %v1310 = vadd.f32 %v1309, %v708
        %v1311 = vsel %vm711, %v1310, -inf
        %1312 = vmax.xlane.f32.xlu0 %v1311
        %v1313 = vpop.xlane.xlu0 %1312
        %v1314 = vsub.f32 %v1310, %v1313
        %v1315 = vmul.f32 %v1314, 1.442695
        %v1316 = vpow.pop %v1315
        %v1317 = vsel %vm711, %v1316, 0.0
        %1318 = vadd.xlane.f32.xlu0 %v1317
        %v1319 = vpop.xlane.xlu0 %1318
        %v1320 = vrcp.pop %v1319
        %v1321 = vmul.f32 %v1316, %v1320
        %v1322 = vpack.c.bf16 %v1321, %v1321
        %1324 = vrot.lane.b32.xlu0 %v1228, 64
        %v1325 = vpop.permute.xlu0 %1324
        %v1327 = vsel %vm711, %v1322, 0
        %v1330 = vsel %vm730, %v1325, 0
        %1332 = vmatprep.subr.bf16.mxu0 0
        %1333 = vmatpush1.bf16.msra.mxu0 0
        %1334 = vmatprep.subr.bf16.mxu0 0
        %1335 = vmatpush1.bf16.msra.mxu0 0
        %1336 = vmatprep.subr.bf16.mxu0 0
        %1337 = vmatpush1.bf16.msra.mxu0 0
        %1338 = vmatprep.subr.bf16.mxu0 0
        %1339 = vmatpush1.bf16.msra.mxu0 0
        %1340 = vmatprep.subr.bf16.mxu0 0
        %1341 = vmatpush1.bf16.msra.mxu0 0
        %1342 = vmatprep.subr.bf16.mxu0 0
        %1343 = vmatpush1.bf16.msra.mxu0 0
        %1344 = vmatprep.subr.bf16.mxu0 0
        %1345 = vmatpush1.bf16.msra.mxu0 0
        %1346 = vmatprep.subr.bf16.mxu0 0
        %1347 = vmatpush1.bf16.msra.mxu0 %v1330
        %1348 = vmatprep.subr.bf16.mxu0 0
        %1349 = vmatpush2.bf16.msra.mxu0 0
        %1350 = vmatprep.subr.bf16.mxu0 0
        %1351 = vmatpush2.bf16.msra.mxu0 0
        %1352 = vmatprep.subr.bf16.mxu0 0
        %1353 = vmatpush2.bf16.msra.mxu0 0
        %1354 = vmatprep.subr.bf16.mxu0 0
        %1355 = vmatpush2.bf16.msra.mxu0 0
        %1356 = vmatprep.subr.bf16.mxu0 0
        %1357 = vmatpush2.bf16.msra.mxu0 0
        %1358 = vmatprep.subr.bf16.mxu0 0
        %1359 = vmatpush2.bf16.msra.mxu0 0
        %1360 = vmatprep.subr.bf16.mxu0 0
        %1361 = vmatpush2.bf16.msra.mxu0 0
        %1362 = vmatprep.subr.bf16.mxu0 0
        %1363 = vmatpush2.bf16.msra.mxu0 0
        %1364 = vmatprep.mubr.bf16.mxu0 0
        %1365 = vmatmul.mubr.bf16.gmra.mxu0 %v1327
        %v1366 = vpop.f32.mrf.mxu0
        %v1367 = vadd.f32 0.0, %v1366
        %v1368 = vpop.f32.mrf.mxu0
        %v1369 = vpop.f32.mrf.mxu0
        %v1370 = vpop.f32.mrf.mxu0
        %1371 = vdwg.mxu0
        %1372 = vrot.lane.b32.xlu0 %v1223, 80
        %v1373 = vpop.permute.xlu0 %1372
        %1375 = vxpose.xlu0.b32.start [1/16] %v1373, 128
        %1376 = vxpose.xlu0.b32.cont [2/16] 0.0, 128
        %1377 = vxpose.xlu0.b32.cont [3/16] 0.0, 128
        %1378 = vxpose.xlu0.b32.cont [4/16] 0.0, 128
        %1379 = vxpose.xlu0.b32.cont [5/16] 0.0, 128
        %1380 = vxpose.xlu0.b32.cont [6/16] 0.0, 128
        %1381 = vxpose.xlu0.b32.cont [7/16] 0.0, 128
        %1382 = vxpose.xlu0.b32.cont [8/16] 0.0, 128
        %1383 = vxpose.xlu0.b32.cont [9/16] 0.0, 128
        %1384 = vxpose.xlu0.b32.cont [10/16] 0.0, 128
        %1385 = vxpose.xlu0.b32.cont [11/16] 0.0, 128
        %1386 = vxpose.xlu0.b32.cont [12/16] 0.0, 128
        %1387 = vxpose.xlu0.b32.cont [13/16] 0.0, 128
        %1388 = vxpose.xlu0.b32.cont [14/16] 0.0, 128
        %1389 = vxpose.xlu0.b32.cont [15/16] 0.0, 128
        %1390 = vxpose.xlu0.b32.end [16/16] 0.0, 128
        %v1391 = vpop.trf.xlu0
        %v1392 = vpop.trf.xlu0
        %v1393 = vpop.trf.xlu0
        %v1394 = vpop.trf.xlu0
        %v1395 = vpop.trf.xlu0
        %v1396 = vpop.trf.xlu0
        %v1397 = vpop.trf.xlu0
        %v1398 = vpop.trf.xlu0
        %v1399 = vpop.trf.xlu0
        %v1400 = vpop.trf.xlu0
        %v1401 = vpop.trf.xlu0
        %v1402 = vpop.trf.xlu0
        %v1403 = vpop.trf.xlu0
        %v1404 = vpop.trf.xlu0
        %v1405 = vpop.trf.xlu0
        %v1406 = vpop.trf.xlu0
        %v1407 = vpack.c.bf16 %v1392, %v1391
        %1408 = vrot.lane.b32.xlu0 %v1228, 112
        %v1409 = vpop.permute.xlu0 %1408
        %v1411 = vsel %vm659, %v1409, 0
        %1413 = vmatprep.subr.bf16.mxu0 0
        %1414 = vmatpush1.bf16.msra.mxu0 0
        %1415 = vmatprep.subr.bf16.mxu0 0
        %1416 = vmatpush1.bf16.msra.mxu0 0
        %1417 = vmatprep.subr.bf16.mxu0 0
        %1418 = vmatpush1.bf16.msra.mxu0 0
        %1419 = vmatprep.subr.bf16.mxu0 0
        %1420 = vmatpush1.bf16.msra.mxu0 0
        %1421 = vmatprep.subr.bf16.mxu0 0
        %1422 = vmatpush1.bf16.msra.mxu0 0
        %1423 = vmatprep.subr.bf16.mxu0 0
        %1424 = vmatpush1.bf16.msra.mxu0 0
        %1425 = vmatprep.subr.bf16.mxu0 0
        %1426 = vmatpush1.bf16.msra.mxu0 0
        %1427 = vmatprep.subr.bf16.mxu0 0
        %1428 = vmatpush1.bf16.msra.mxu0 %v1407
        %1429 = vmatprep.subr.bf16.mxu0 0
        %1430 = vmatpush2.bf16.msra.mxu0 0
        %1431 = vmatprep.subr.bf16.mxu0 0
        %1432 = vmatpush2.bf16.msra.mxu0 0
        %1433 = vmatprep.subr.bf16.mxu0 0
        %1434 = vmatpush2.bf16.msra.mxu0 0
        %1435 = vmatprep.subr.bf16.mxu0 0
        %1436 = vmatpush2.bf16.msra.mxu0 0
        %1437 = vmatprep.subr.bf16.mxu0 0
        %1438 = vmatpush2.bf16.msra.mxu0 0
        %1439 = vmatprep.subr.bf16.mxu0 0
        %1440 = vmatpush2.bf16.msra.mxu0 0
        %1441 = vmatprep.subr.bf16.mxu0 0
        %1442 = vmatpush2.bf16.msra.mxu0 0
        %1443 = vmatprep.subr.bf16.mxu0 0
        %1444 = vmatpush2.bf16.msra.mxu0 0
        %1445 = vmatprep.mubr.bf16.mxu0 0
        %1446 = vmatmul.mubr.bf16.gmra.mxu0 %v1411
        %v1447 = vpop.f32.mrf.mxu0
        %v1448 = vadd.f32 0.0, %v1447
        %v1449 = vpop.f32.mrf.mxu0
        %v1450 = vpop.f32.mrf.mxu0
        %v1451 = vpop.f32.mrf.mxu0
        %1452 = vdwg.mxu0
        %v1453 = vmul.f32 %v1448, 0.25
        %v1454 = vadd.f32 %v1453, %v708
        %v1455 = vsel %vm711, %v1454, -inf
        %1456 = vmax.xlane.f32.xlu0 %v1455
        %v1457 = vpop.xlane.xlu0 %1456
        %v1458 = vsub.f32 %v1454, %v1457
        %v1459 = vmul.f32 %v1458, 1.442695
        %v1460 = vpow.pop %v1459
        %v1461 = vsel %vm711, %v1460, 0.0
        %1462 = vadd.xlane.f32.xlu0 %v1461
        %v1463 = vpop.xlane.xlu0 %1462
        %v1464 = vrcp.pop %v1463
        %v1465 = vmul.f32 %v1460, %v1464
        %v1466 = vpack.c.bf16 %v1465, %v1465
        %1467 = vrot.lane.b32.xlu0 %v1228, 48
        %v1468 = vpop.permute.xlu0 %1467
        %v1470 = vsel %vm711, %v1466, 0
        %v1473 = vsel %vm730, %v1468, 0
        %1475 = vmatprep.subr.bf16.mxu0 0
        %1476 = vmatpush1.bf16.msra.mxu0 0
        %1477 = vmatprep.subr.bf16.mxu0 0
        %1478 = vmatpush1.bf16.msra.mxu0 0
        %1479 = vmatprep.subr.bf16.mxu0 0
        %1480 = vmatpush1.bf16.msra.mxu0 0
        %1481 = vmatprep.subr.bf16.mxu0 0
        %1482 = vmatpush1.bf16.msra.mxu0 0
        %1483 = vmatprep.subr.bf16.mxu0 0
        %1484 = vmatpush1.bf16.msra.mxu0 0
        %1485 = vmatprep.subr.bf16.mxu0 0
        %1486 = vmatpush1.bf16.msra.mxu0 0
        %1487 = vmatprep.subr.bf16.mxu0 0
        %1488 = vmatpush1.bf16.msra.mxu0 0
        %1489 = vmatprep.subr.bf16.mxu0 0
        %1490 = vmatpush1.bf16.msra.mxu0 %v1473
        %1491 = vmatprep.subr.bf16.mxu0 0
        %1492 = vmatpush2.bf16.msra.mxu0 0
        %1493 = vmatprep.subr.bf16.mxu0 0
        %1494 = vmatpush2.bf16.msra.mxu0 0
        %1495 = vmatprep.subr.bf16.mxu0 0
        %1496 = vmatpush2.bf16.msra.mxu0 0
        %1497 = vmatprep.subr.bf16.mxu0 0
        %1498 = vmatpush2.bf16.msra.mxu0 0
        %1499 = vmatprep.subr.bf16.mxu0 0
        %1500 = vmatpush2.bf16.msra.mxu0 0
        %1501 = vmatprep.subr.bf16.mxu0 0
        %1502 = vmatpush2.bf16.msra.mxu0 0
        %1503 = vmatprep.subr.bf16.mxu0 0
        %1504 = vmatpush2.bf16.msra.mxu0 0
        %1505 = vmatprep.subr.bf16.mxu0 0
        %1506 = vmatpush2.bf16.msra.mxu0 0
        %1507 = vmatprep.mubr.bf16.mxu0 0
        %1508 = vmatmul.mubr.bf16.gmra.mxu0 %v1470
        %v1509 = vpop.f32.mrf.mxu0
        %v1510 = vadd.f32 0.0, %v1509
        %v1511 = vpop.f32.mrf.mxu0
        %v1512 = vpop.f32.mrf.mxu0
        %v1513 = vpop.f32.mrf.mxu0
        %1514 = vdwg.mxu0
        %1516 = vrot.lane.b32.xlu0 %v1510, 16
        %v1517 = vpop.permute.xlu0 %1516
        %v1519 = vsel %vm659, %v1367, %v1517
        %s1520 = scalar_lea.vmem %s6, 32
        %v1521 = vld [vmem:[%s1520] sm:$0xff]
        %v1522 = vld [vmem:[%s1520 + $0x8] sm:$0xff]
        %v1523 = vld [vmem:[%s1520 + $0x10] sm:$0xff]
        %v1524 = vld [vmem:[%s1520 + $0x18] sm:$0xff]
        %s1525 = scalar_lea.vmem %s7, 1
        %v1526 = vld [vmem:[%s1525] sm:$0x1]
        %v1527 = vpack.c.bf16 %v1519, %v1519
        %v1528 = vpack.c.bf16 %v1522, %v1521
        %v1529 = vpack.c.bf16 %v1524, %v1523
        %v1531 = vlaneseq
        %v1532 = vshrl.u32 %v1531, 7
        %v1533 = vsub.s32 0, %v1532
        %v1534 = vrot.slane %v1526, %v1533
        %v1537 = vsel %vm535, %v1527, 0
        %1539 = vmatprep.subr.bf16.mxu0 0
        %1540 = vmatpush1.bf16.msra.mxu0 0
        %1541 = vmatprep.subr.bf16.mxu0 0
        %1542 = vmatpush1.bf16.msra.mxu0 0
        %1543 = vmatprep.subr.bf16.mxu0 0
        %1544 = vmatpush1.bf16.msra.mxu0 0
        %1545 = vmatprep.subr.bf16.mxu0 0
        %1546 = vmatpush1.bf16.msra.mxu0 0
        %1547 = vmatprep.subr.bf16.mxu0 0
        %1548 = vmatpush1.bf16.msra.mxu0 0
        %1549 = vmatprep.subr.bf16.mxu0 0
        %1550 = vmatpush1.bf16.msra.mxu0 0
        %1551 = vmatprep.subr.bf16.mxu0 0
        %1552 = vmatpush1.bf16.msra.mxu0 %v1529
        %1553 = vmatprep.subr.bf16.mxu0 0
        %1554 = vmatpush1.bf16.msra.mxu0 %v1528
        %1555 = vmatprep.subr.bf16.mxu0 0
        %1556 = vmatpush2.bf16.msra.mxu0 0
        %1557 = vmatprep.subr.bf16.mxu0 0
        %1558 = vmatpush2.bf16.msra.mxu0 0
        %1559 = vmatprep.subr.bf16.mxu0 0
        %1560 = vmatpush2.bf16.msra.mxu0 0
        %1561 = vmatprep.subr.bf16.mxu0 0
        %1562 = vmatpush2.bf16.msra.mxu0 0
        %1563 = vmatprep.subr.bf16.mxu0 0
        %1564 = vmatpush2.bf16.msra.mxu0 0
        %1565 = vmatprep.subr.bf16.mxu0 0
        %1566 = vmatpush2.bf16.msra.mxu0 0
        %1567 = vmatprep.subr.bf16.mxu0 0
        %1568 = vmatpush2.bf16.msra.mxu0 0
        %1569 = vmatprep.subr.bf16.mxu0 0
        %1570 = vmatpush2.bf16.msra.mxu0 0
        %1571 = vmatprep.mubr.bf16.mxu0 0
        %1572 = vmatmul.mubr.bf16.gmra.mxu0 %v1537
        %v1573 = vpop.f32.mrf.mxu0
        %v1574 = vadd.f32 %v1534, %v1573
        %v1575 = vpop.f32.mrf.mxu0
        %v1576 = vpop.f32.mrf.mxu0
        %v1577 = vpop.f32.mrf.mxu0
        %1578 = vdwg.mxu0
        %v1579 = vadd.f32 %v1574, %v1168
        %s1580 = scalar_lea.vmem %s8, 1
        %v1581 = vld [vmem:[%s1580] sm:$0x1]
        %s1582 = scalar_lea.vmem %s9, 1
        %v1583 = vld [vmem:[%s1582] sm:$0x1]
        %v1584 = vsel %vm535, %v1579, 0.0
        %1585 = vadd.xlane.f32.xlu0 %v1584
        %v1586 = vpop.xlane.xlu0 %1585
        %v1587 = vmul.f32 %v1586, %v539
        %v1588 = vsub.f32 %v1579, %v1587
        %v1589 = vmul.f32 %v1588, %v1588
        %v1590 = vsel %vm535, %v1589, 0.0
        %1591 = vadd.xlane.f32.xlu0 %v1590
        %v1592 = vpop.xlane.xlu0 %1591
        %v1593 = vmul.f32 %v1592, %v539
        %v1594 = vadd.f32 %v1593, 1e-12
        %v1595 = vrsqrt.pop %v1594
        %v1596 = vmul.f32 %v1588, %v1595
        %v1598 = vlaneseq
        %v1599 = vshrl.u32 %v1598, 7
        %v1600 = vsub.s32 0, %v1599
        %v1601 = vrot.slane %v1581, %v1600
        %v1603 = vmul.f32 %v1596, %v1601
        %v1605 = vlaneseq
        %v1606 = vshrl.u32 %v1605, 7
        %v1607 = vsub.s32 0, %v1606
        %v1608 = vrot.slane %v1583, %v1607
        %v1610 = vadd.f32 %v1603, %v1608
        %s1611 = scalar_lea.vmem %s10, 32
        %v1612 = vld [vmem:[%s1611] sm:$0xff]
        %v1613 = vld [vmem:[%s1611 + $0x8] sm:$0xff]
        %v1614 = vld [vmem:[%s1611 + $0x10] sm:$0xff]
        %v1615 = vld [vmem:[%s1611 + $0x18] sm:$0xff]
        %s1616 = scalar_lea.vmem %s11, 1
        %v1617 = vld [vmem:[%s1616] sm:$0x1]
        %v1618 = vpack.c.bf16 %v1610, %v1610
        %v1619 = vpack.c.bf16 %v1613, %v1612
        %v1620 = vpack.c.bf16 %v1615, %v1614
        %v1622 = vlaneseq
        %v1623 = vshrl.u32 %v1622, 7
        %v1624 = vsub.s32 0, %v1623
        %v1625 = vrot.slane %v1617, %v1624
        %v1628 = vsel %vm535, %v1618, 0
        %1630 = vmatprep.subr.bf16.mxu0 0
        %1631 = vmatpush1.bf16.msra.mxu0 0
        %1632 = vmatprep.subr.bf16.mxu0 0
        %1633 = vmatpush1.bf16.msra.mxu0 0
        %1634 = vmatprep.subr.bf16.mxu0 0
        %1635 = vmatpush1.bf16.msra.mxu0 0
        %1636 = vmatprep.subr.bf16.mxu0 0
        %1637 = vmatpush1.bf16.msra.mxu0 0
        %1638 = vmatprep.subr.bf16.mxu0 0
        %1639 = vmatpush1.bf16.msra.mxu0 0
        %1640 = vmatprep.subr.bf16.mxu0 0
        %1641 = vmatpush1.bf16.msra.mxu0 0
        %1642 = vmatprep.subr.bf16.mxu0 0
        %1643 = vmatpush1.bf16.msra.mxu0 %v1620
        %1644 = vmatprep.subr.bf16.mxu0 0
        %1645 = vmatpush1.bf16.msra.mxu0 %v1619
        %1646 = vmatprep.subr.bf16.mxu0 0
        %1647 = vmatpush2.bf16.msra.mxu0 0
        %1648 = vmatprep.subr.bf16.mxu0 0
        %1649 = vmatpush2.bf16.msra.mxu0 0
        %1650 = vmatprep.subr.bf16.mxu0 0
        %1651 = vmatpush2.bf16.msra.mxu0 0
        %1652 = vmatprep.subr.bf16.mxu0 0
        %1653 = vmatpush2.bf16.msra.mxu0 0
        %1654 = vmatprep.subr.bf16.mxu0 0
        %1655 = vmatpush2.bf16.msra.mxu0 0
        %1656 = vmatprep.subr.bf16.mxu0 0
        %1657 = vmatpush2.bf16.msra.mxu0 0
        %1658 = vmatprep.subr.bf16.mxu0 0
        %1659 = vmatpush2.bf16.msra.mxu0 0
        %1660 = vmatprep.subr.bf16.mxu0 0
        %1661 = vmatpush2.bf16.msra.mxu0 0
        %1662 = vmatprep.mubr.bf16.mxu0 0
        %1663 = vmatmul.mubr.bf16.gmra.mxu0 %v1628
        %v1664 = vpop.f32.mrf.mxu0
        %v1665 = vadd.f32 %v1625, %v1664
        %v1666 = vpop.f32.mrf.mxu0
        %v1667 = vpop.f32.mrf.mxu0
        %v1668 = vpop.f32.mrf.mxu0
        %1669 = vdwg.mxu0
        %v1670 = vmul.f32 %v1665, 0.5
        %v1671 = vmul.f32 %v1665, 0.044715
        %v1672 = vmul.f32 %v1671, %v1665
        %v1673 = vmul.f32 %v1672, %v1665
        %v1674 = vadd.f32 %v1665, %v1673
        %v1675 = vmul.f32 %v1674, 0.7978846
        %v1676 = vtanh.pop %v1675
        %v1677 = vadd.f32 %v1676, 1.0
        %v1678 = vmul.f32 %v1670, %v1677
        %s1679 = scalar_lea.vmem %s12, 64
        %v1680 = vld [vmem:[%s1679] sm:$0xff]
        %v1681 = vld [vmem:[%s1679 + $0x8] sm:$0xff]
        %v1682 = vld [vmem:[%s1679 + $0x10] sm:$0xff]
        %v1683 = vld [vmem:[%s1679 + $0x18] sm:$0xff]
        %v1684 = vld [vmem:[%s1679 + $0x20] sm:$0xff]
        %v1685 = vld [vmem:[%s1679 + $0x28] sm:$0xff]
        %v1686 = vld [vmem:[%s1679 + $0x30] sm:$0xff]
        %v1687 = vld [vmem:[%s1679 + $0x38] sm:$0xff]
        %s1688 = scalar_lea.vmem %s13, 1
        %v1689 = vld [vmem:[%s1688] sm:$0x1]
        %v1690 = vpack.c.bf16 %v1678, %v1678
        %v1691 = vpack.c.bf16 %v1681, %v1680
        %v1692 = vpack.c.bf16 %v1683, %v1682
        %v1693 = vpack.c.bf16 %v1685, %v1684
        %v1694 = vpack.c.bf16 %v1687, %v1686
        %v1696 = vlaneseq
        %v1697 = vshrl.u32 %v1696, 7
        %v1698 = vsub.s32 0, %v1697
        %v1699 = vrot.slane %v1689, %v1698
        %v1702 = vsel %vm1095, %v1690, 0
        %1704 = vmatprep.subr.bf16.mxu0 0
        %1705 = vmatpush1.bf16.msra.mxu0 0
        %1706 = vmatprep.subr.bf16.mxu0 0
        %1707 = vmatpush1.bf16.msra.mxu0 0
        %1708 = vmatprep.subr.bf16.mxu0 0
        %1709 = vmatpush1.bf16.msra.mxu0 0
        %1710 = vmatprep.subr.bf16.mxu0 0
        %1711 = vmatpush1.bf16.msra.mxu0 0
        %1712 = vmatprep.subr.bf16.mxu0 0
        %1713 = vmatpush1.bf16.msra.mxu0 %v1694
        %1714 = vmatprep.subr.bf16.mxu0 0
        %1715 = vmatpush1.bf16.msra.mxu0 %v1693
        %1716 = vmatprep.subr.bf16.mxu0 0
        %1717 = vmatpush1.bf16.msra.mxu0 %v1692
        %1718 = vmatprep.subr.bf16.mxu0 0
        %1719 = vmatpush1.bf16.msra.mxu0 %v1691
        %1720 = vmatprep.subr.bf16.mxu0 0
        %1721 = vmatpush2.bf16.msra.mxu0 0
        %1722 = vmatprep.subr.bf16.mxu0 0
        %1723 = vmatpush2.bf16.msra.mxu0 0
        %1724 = vmatprep.subr.bf16.mxu0 0
        %1725 = vmatpush2.bf16.msra.mxu0 0
        %1726 = vmatprep.subr.bf16.mxu0 0
        %1727 = vmatpush2.bf16.msra.mxu0 0
        %1728 = vmatprep.subr.bf16.mxu0 0
        %1729 = vmatpush2.bf16.msra.mxu0 0
        %1730 = vmatprep.subr.bf16.mxu0 0
        %1731 = vmatpush2.bf16.msra.mxu0 0
        %1732 = vmatprep.subr.bf16.mxu0 0
        %1733 = vmatpush2.bf16.msra.mxu0 0
        %1734 = vmatprep.subr.bf16.mxu0 0
        %1735 = vmatpush2.bf16.msra.mxu0 0
        %1736 = vmatprep.mubr.bf16.mxu0 0
        %1737 = vmatmul.mubr.bf16.gmra.mxu0 %v1702
        %v1738 = vpop.f32.mrf.mxu0
        %v1739 = vadd.f32 %v1699, %v1738
        %v1740 = vpop.f32.mrf.mxu0
        %v1741 = vpop.f32.mrf.mxu0
        %v1742 = vpop.f32.mrf.mxu0
        %1743 = vdwg.mxu0
        %v1744 = vadd.f32 %v1739, %v1610
        %s1745 = scalar_lea.vmem %s14, 1
        %v1746 = vld [vmem:[%s1745] sm:$0x1]
        %s1747 = scalar_lea.vmem %s15, 1
        %v1748 = vld [vmem:[%s1747] sm:$0x1]
        %v1749 = vsel %vm535, %v1744, 0.0
        %1750 = vadd.xlane.f32.xlu0 %v1749
        %v1751 = vpop.xlane.xlu0 %1750
        %v1752 = vmul.f32 %v1751, %v539
        %v1753 = vsub.f32 %v1744, %v1752
        %v1754 = vmul.f32 %v1753, %v1753
        %v1755 = vsel %vm535, %v1754, 0.0
        %1756 = vadd.xlane.f32.xlu0 %v1755
        %v1757 = vpop.xlane.xlu0 %1756
        %v1758 = vmul.f32 %v1757, %v539
        %v1759 = vadd.f32 %v1758, 1e-12
        %v1760 = vrsqrt.pop %v1759
        %v1761 = vmul.f32 %v1753, %v1760
        %v1763 = vlaneseq
        %v1764 = vshrl.u32 %v1763, 7
        %v1765 = vsub.s32 0, %v1764
        %v1766 = vrot.slane %v1746, %v1765
        %v1768 = vmul.f32 %v1761, %v1766
        %v1770 = vlaneseq
        %v1771 = vshrl.u32 %v1770, 7
        %v1772 = vsub.s32 0, %v1771
        %v1773 = vrot.slane %v1748, %v1772
        %v1775 = vadd.f32 %v1768, %v1773
        %vm1776 = vcmask 253952
        %1777 = vst.msk [vmem:[%s522] sm:$0x1] %vm1776, %v1775
        %s1778 = sand.u32 %s384, 1
        %s1779 = scalar_lea.sflag [#allocation3], %s1778
        %s1780 = sand.u32 %s384, 1
        %s1781 = scalar_lea.vmem [#allocation2], %s1780
        // Predicated region
        $region85: #{bert_forward.1} parent=83 // pred_check
          %p1782 = pneg %p394
        $region86: #{bert_forward.1} parent=83 // pred_check_branch
          %1784 = sbr.rel (%p1782) target = $region88
        $region87: #{bert_forward.1} parent=83 // pred_region
          %s1786 = ssub.s32 16, 16
          %1787 = vsyncadd %s1779, %s1786
          %s1788 = smul.addr %s30, 16
          %s1789 = scalar_lea.hbm %s16, %s1788
          %s1791 = sshll.u32 %s1781, 4
          %s1792 = int_to_ptr.vmem [resolvable:$true] %s1791
          %1794 = dma.vmem_to_hbm [thread:$0]  %s1792, 16, %s1789, %s1779
        $region88: #{bert_forward.1} parent=83 // pred_fallthru
          _
      $region84: #{bert_forward.1} parent=5 // pred_fallthru
        _
      %p1795 = scmp.le.s32.totalorder 2, %s25
      // Predicated region
      $region89: #{bert_forward.1} parent=5 // pred_check
        %p1796 = pneg %p1795
      $region90: #{bert_forward.1} parent=5 // pred_check_branch
        %1798 = sbr.rel (%p1796) target = $region92
      $region91: #{bert_forward.1} parent=5 // pred_region
        %s1799 = ssub.s32 %s25, 2
        // Predicated region
        $region93: #{bert_forward.1} parent=91 // pred_check
          %p1800 = pneg %p400
        $region94: #{bert_forward.1} parent=91 // pred_check_branch
          %1802 = sbr.rel (%p1800) target = $region96
        $region95: #{bert_forward.1} parent=91 // pred_region
          %s1803 = sand.u32 %s385, 1
          %s1804 = scalar_lea.sflag [#allocation3], %s1803
          %s1805 = sand.u32 %s385, 1
          %s1806 = scalar_lea.vmem [#allocation2], %s1805
          %1807 = dma.done %s1804, 16
        $region96: #{bert_forward.1} parent=91 // pred_fallthru
          _
      $region92: #{bert_forward.1} parent=5 // pred_fallthru
        _
    $region6: #{bert_forward.1} parent=1 // loop_footer
      %s29 = sadd.s32 1, %s25
    $region7: #{bert_forward.1} parent=1 // loop_footer_branch
      %24 = sbr.rel target = $region3
    $region8: #{bert_forward.1} parent=1 // loop_exit
      _
    %1808 = vsyncpa [#allocation3], 1
    %s1809 = scalar_lea.sflag [#allocation3], 1
    %1810 = vsyncpa %s1809, 1

</llo_original>
